<compile_context>
chip_gen: v6e
topology: v6e:2x2x1
jax: 0.10.0
libtpu: 0.0.40
codegen_flags: <defaults>
</compile_context>

<pallas_src>
import functools

import jax
import jax.numpy as jnp
from jax import lax
from jax.experimental import pallas as pl
from jax.experimental.pallas import tpu as pltpu


def _round_up(x, m):
    return ((x + m - 1) // m) * m


# -----------------------------------------------------------------------------
# Parameter init (deterministic, synthetic weights) + kernel-ready packing
# -----------------------------------------------------------------------------
def _init_linear(key, in_dim, out_dim, scale=0.02):
    kw, kb = jax.random.split(key)
    w = (scale * jax.random.normal(kw, (in_dim, out_dim))).astype(jnp.float32)
    b = (scale * jax.random.normal(kb, (1, out_dim))).astype(jnp.float32)
    return w, b


def pack_params(raw, n_heads, c_in, num_labels):
    """Pack raw f32 weights into kernel-ready form:
       * matmul weights cast to bf16 (biases stay f32),
       * 1/sqrt(d_keys) attention scale folded into Wq / bq,
       * c_in of the first MLP layer zero-padded to a 128-lane multiple,
       * classifier output padded to 128 lanes (sliced back in the wrapper)."""
    d_model = raw["te_w2"].shape[1]
    dk = d_model // n_heads
    hidden = raw["cls_w"].shape[0]

    c_in_pad = _round_up(max(c_in, 1), 128)
    n_lab_pad = _round_up(max(num_labels, 1), 128)

    p = {"embed_table": raw["embed_table"]}

    w1 = jnp.zeros((c_in_pad, raw["te_w1"].shape[1]), jnp.float32)
    w1 = w1.at[:c_in].set(raw["te_w1"])
    p["te_w1"] = w1.astype(jnp.bfloat16)
    p["te_b1"] = raw["te_b1"]
    p["te_w2"] = raw["te_w2"].astype(jnp.bfloat16)
    p["te_b2"] = raw["te_b2"]

    scale = 1.0 / (float(dk) ** 0.5)            # folded attention scale
    p["rp_wq"] = (raw["rp_wq"] * scale).astype(jnp.bfloat16)
    p["rp_bq"] = raw["rp_bq"] * scale
    p["rp_wk"] = raw["rp_wk"]                   # K/V run once in the wrapper (f32)
    p["rp_bk"] = raw["rp_bk"]
    p["rp_wv"] = raw["rp_wv"]
    p["rp_bv"] = raw["rp_bv"]
    p["rp_wo"] = raw["rp_wo"].astype(jnp.bfloat16)
    p["rp_bo"] = raw["rp_bo"]

    cw = jnp.zeros((hidden, n_lab_pad), jnp.float32).at[:, :num_labels].set(raw["cls_w"])
    cb = jnp.zeros((1, n_lab_pad), jnp.float32).at[:, :num_labels].set(raw["cls_b"])
    p["cls_w"] = cw.astype(jnp.bfloat16)
    p["cls_b"] = cb

    p["meta"] = dict(n_heads=n_heads, d_keys=dk, c_in=c_in, c_in_pad=c_in_pad,
                     num_labels=num_labels, n_lab_pad=n_lab_pad)
    return p


# -----------------------------------------------------------------------------
# Fused kernel: per grid step processes Bc batches as R = Bc*L flattened rows
#   TokenEmbedding MLP -> reprogramming cross-attention -> (identity backbone)
#   -> masked mean pooling over [patch tokens ; text tokens] -> classifier
# -----------------------------------------------------------------------------
def _timellm_fused_kernel(patch_ref, kt_ref, v_ref, txt_ref, den_ref,
                          w1_ref, b1_ref, w2_ref, b2_ref,
                          wq_ref, bq_ref, wo_ref, bo_ref,
                          wc_ref, bc_ref, o_ref, ctx_ref,
                          *, n_heads, d_keys, patches_per_batch):
    # --- TokenEmbedding two-layer MLP on flattened rows: (R, c_in_pad) -> (R, d_model)
    x = patch_ref[0]                                                 # (R, c_in_pad) bf16
    h = jnp.dot(x, w1_ref[...], preferred_element_type=jnp.float32) + b1_ref[...]
    h = jnp.maximum(h, 0.0)
    e = (jnp.dot(h.astype(jnp.bfloat16), w2_ref[...],
                 preferred_element_type=jnp.float32) + b2_ref[...]).astype(jnp.bfloat16)

    # --- Reprogramming cross-attention ---
    # Full-width Q projection (1/sqrt(dk) pre-folded into Wq/bq at pack time).
    q_all = (jnp.dot(e, wq_ref[...], preferred_element_type=jnp.float32)
             + bq_ref[...]).astype(jnp.bfloat16)                     # (R, H*dk)
    for hd in range(n_heads):                                        # tiny static unroll
        sl = slice(hd * d_keys, (hd + 1) * d_keys)
        s = jnp.dot(q_all[:, sl], kt_ref[hd],
                    preferred_element_type=jnp.float32)              # (R, S)
        s = s - jnp.max(s, axis=-1, keepdims=True)
        pexp = jnp.exp(s)
        attn = pexp / jnp.sum(pexp, axis=-1, keepdims=True)          # exact f32 softmax
        ctx_ref[:, sl] = jnp.dot(attn.astype(jnp.bfloat16), v_ref[hd],
                                 preferred_element_type=jnp.float32)  # (R, dk)
    # single full-width out-projection with the unsplit Wo
    rep = jnp.dot(ctx_ref[...].astype(jnp.bfloat16), wo_ref[...],
                  preferred_element_type=jnp.float32) + bo_ref[...]   # (R, d_llm)

    # TODO(synk): the pretrained HF LLM backbone (AutoModel) cannot be rebuilt
    # from the module definition alone; stand-in is identity, so
    # last_hidden_state == [ts_embed ; text_embeds].

    # --- masked mean pooling over [patch tokens (mask=1) ; text tokens] ---
    Bc = txt_ref.shape[1]
    R = rep.shape[0]
    if Bc == 1:
        ts_sum = jnp.sum(rep, axis=0, keepdims=True)                 # (1, d_llm)
    else:
        b_idx = lax.broadcasted_iota(jnp.int32, (Bc, R), 0)
        r_idx = lax.broadcasted_iota(jnp.int32, (Bc, R), 1)
        seg = jnp.logical_and(r_idx >= b_idx * patches_per_batch,
                              r_idx < (b_idx + 1) * patches_per_batch
                              ).astype(jnp.float32)                  # (Bc, R)
        ts_sum = jnp.dot(seg, rep, preferred_element_type=jnp.float32)
    pooled = (ts_sum + txt_ref[0]) / den_ref[0]                      # exact f32 mean

    # --- classifier head (output lanes padded to 128 -> unmasked store) ---
    o_ref[0] = jnp.dot(pooled.astype(jnp.bfloat16), wc_ref[...],
                       preferred_element_type=jnp.float32) + bc_ref[...]


def timellm_fused(patches_g, kt_heads, v_heads, txt_sum_g, den_g, p,
                  *, n_heads, d_keys, patches_per_batch):
    NC, R, c_in_pad = patches_g.shape
    _, Bc, hidden = txt_sum_g.shape
    n_lab_pad = p["cls_w"].shape[1]

    kernel = functools.partial(_timellm_fused_kernel, n_heads=n_heads,
                               d_keys=d_keys, patches_per_batch=patches_per_batch)

    def full2(shape):
        return pl.BlockSpec(shape, lambda i: (0, 0))

    def full3(shape):
        return pl.BlockSpec(shape, lambda i: (0, 0, 0))

    out = pl.pallas_call(
        kernel,
        out_shape=jax.ShapeDtypeStruct((NC, Bc, n_lab_pad), jnp.float32),
        grid=(NC,),
        in_specs=[
            pl.BlockSpec((1, R, c_in_pad), lambda i: (i, 0, 0)),     # patches (flattened rows)
            full3(kt_heads.shape),                                   # K^T  (H, dk, S)
            full3(v_heads.shape),                                    # V    (H, S, dk)
            pl.BlockSpec((1, Bc, hidden), lambda i: (i, 0, 0)),      # text mask-sum
            pl.BlockSpec((1, Bc, 1), lambda i: (i, 0, 0)),           # pooling denominator
            full2(p["te_w1"].shape), full2(p["te_b1"].shape),
            full2(p["te_w2"].shape), full2(p["te_b2"].shape),
            full2(p["rp_wq"].shape), full2(p["rp_bq"].shape),
            full2(p["rp_wo"].shape), full2(p["rp_bo"].shape),
            full2(p["cls_w"].shape), full2(p["cls_b"].shape),
        ],
        out_specs=pl.BlockSpec((1, Bc, n_lab_pad), lambda i: (i, 0, 0)),
        scratch_shapes=[pltpu.VMEM((R, n_heads * d_keys), jnp.float32)],
        compiler_params=pltpu.CompilerParams(
            dimension_semantics=("parallel",)),  # NC chunks -> v7x TensorCores
    )(patches_g, kt_heads, v_heads, txt_sum_g, den_g,
      p["te_w1"], p["te_b1"], p["te_w2"], p["te_b2"],
      p["rp_wq"], p["rp_bq"], p["rp_wo"], p["rp_bo"],
      p["cls_w"], p["cls_b"])
    return out


# -----------------------------------------------------------------------------
# TimeLLM forward (thin glue in plain JAX; all hot math in the fused kernel)
# -----------------------------------------------------------------------------
def timellm_forward(params, input_ids, attention_mask, reg_ts, *,
                    patch_len, stride, n_heads, num_tokens, enable_text=True):
    B, T, F = reg_ts.shape
    meta = params["meta"]
    c_in, c_in_pad = meta["c_in"], meta["c_in_pad"]
    num_labels, n_lab_pad = meta["num_labels"], meta["n_lab_pad"]
    d_keys = meta["d_keys"]
    embed_table = params["embed_table"]
    hidden = embed_table.shape[1]

    # --- patchify: ReplicationPad1d + unfold + variable concat ---
    ts = jnp.transpose(reg_ts, (0, 2, 1))                       # (B, V, T)
    pad = jnp.repeat(ts[:, :, -1:], stride, axis=-1)
    tsp = jnp.concatenate([ts, pad], axis=-1)                   # (B, V, T+stride)
    Tp = tsp.shape[-1]
    L = (Tp - patch_len) // stride + 1
    if stride == patch_len and Tp >= L * patch_len:
        # non-overlapping patches: pure reshape, no gather
        patches = tsp[:, :, :L * patch_len].reshape(B, F, L, patch_len)
    else:
        starts = jnp.arange(L) * stride
        idx = starts[:, None] + jnp.arange(patch_len)[None, :]
        patches = tsp[:, :, idx]                                 # (B, V, L, patch_len)
    patches = jnp.transpose(patches, (0, 2, 1, 3)).reshape(B, L, c_in)

    # --- text pooling statistics precomputed once (no per-step (B,Lt,H) DMA) ---
    if enable_text:
        text_embeds = jnp.take(embed_table, input_ids, axis=0)  # (B, Lt, hidden)
        mask = attention_mask.astype(jnp.float32)
        txt_sum = jnp.einsum('bt,bth->bh', mask, text_embeds)   # (B, hidden)
        den = (jnp.sum(mask, axis=1) + float(L)).reshape(B, 1)  # (B, 1)
    else:
        txt_sum = jnp.zeros((B, hidden), jnp.float32)
        den = jnp.full((B, 1), float(L), jnp.float32)

    # --- batch-invariant K/V projection of prototype embeddings (plain jnp, once) ---
    source = embed_table[:num_tokens]                            # (S, hidden)
    k_all = source @ params["rp_wk"] + params["rp_bk"]           # (S, H*dk)
    v_all = source @ params["rp_wv"] + params["rp_bv"]
    S = num_tokens
    kt_heads = jnp.transpose(k_all.reshape(S, n_heads, d_keys),
                             (1, 2, 0)).astype(jnp.bfloat16)     # (H, dk, S) pre-transposed
    v_heads = jnp.transpose(v_all.reshape(S, n_heads, d_keys),
                            (1, 0, 2)).astype(jnp.bfloat16)      # (H, S, dk)

    # --- chunk the batch: NC=2 chunks (one per v7x TC) when B is even, else 1 ---
    NC = 2 if (B % 2 == 0 and B >= 2) else 1
    Bc = B // NC
    R = Bc * L
    patches_pad = jnp.zeros((B, L, c_in_pad), jnp.bfloat16)
    patches_pad = patches_pad.at[:, :, :c_in].set(patches.astype(jnp.bfloat16))
    patches_g = patches_pad.reshape(NC, R, c_in_pad)
    txt_sum_g = txt_sum.reshape(NC, Bc, hidden)
    den_g = den.reshape(NC, Bc, 1)

    out = timellm_fused(patches_g, kt_heads, v_heads, txt_sum_g, den_g, params,
                        n_heads=n_heads, d_keys=d_keys, patches_per_batch=L)
    return out.reshape(B, n_lab_pad)[:, :num_labels]


# -----------------------------------------------------------------------------
# Main
# -----------------------------------------------------------------------------
if __name__ == "__main__":
    # small but consistent shapes; hidden = d_model = 128 for lane-dense tiles
    B, T, F = 2, 16, 4              # reg_ts: (B, T, F)
    patch_len, stride = 8, 8
    hidden = 128                    # LLM hidden size (d_llm) == d_model here
    d_model = hidden
    n_heads = 4
    L_text = 8
    vocab = 256
    num_tokens = 128                # prototype ("source") rows; lane-dense S
    num_labels = 3
    c_in = F * patch_len            # patch feature dim

    key = jax.random.PRNGKey(0)
    keys = jax.random.split(key, 10)

    raw = {}
    raw["embed_table"] = (0.02 * jax.random.normal(keys[0], (vocab, hidden))).astype(jnp.float32)
    raw["te_w1"], raw["te_b1"] = _init_linear(keys[1], c_in, 2 * d_model)
    raw["te_w2"], raw["te_b2"] = _init_linear(keys[2], 2 * d_model, d_model)
    raw["rp_wq"], raw["rp_bq"] = _init_linear(keys[3], d_model, d_model)
    raw["rp_wk"], raw["rp_bk"] = _init_linear(keys[4], hidden, d_model)
    raw["rp_wv"], raw["rp_bv"] = _init_linear(keys[5], hidden, d_model)
    raw["rp_wo"], raw["rp_bo"] = _init_linear(keys[6], d_model, hidden)
    raw["cls_w"], raw["cls_b"] = _init_linear(keys[7], hidden, num_labels)
    params = pack_params(raw, n_heads, c_in, num_labels)

    input_ids = jax.random.randint(keys[8], (B, L_text), 0, vocab, dtype=jnp.int32)
    attention_mask = jnp.ones((B, L_text), jnp.float32).at[0, :2].set(0.0)  # left-padded row 0
    reg_ts = jax.random.normal(keys[9], (B, T, F)).astype(jnp.float32)

    logits = timellm_forward(params, input_ids, attention_mask, reg_ts,
                             patch_len=patch_len, stride=stride,
                             n_heads=n_heads, num_tokens=num_tokens,
                             enable_text=True)
    jax.block_until_ready(logits)
    assert logits.shape == (B, num_labels)
    assert bool(jnp.all(jnp.isfinite(logits)))
    print("KERNEL_OK")
</pallas_src>

<mosaic_0001>
module attributes {stable_mosaic.version = 11 : i64} {
  func.func @_timellm_fused_kernel(%arg0: i32, %arg1: memref<1x3x128xbf16, #tpu.memory_space<vmem>>, %arg2: memref<4x32x128xbf16, #tpu.memory_space<vmem>>, %arg3: memref<4x128x32xbf16, #tpu.memory_space<vmem>>, %arg4: memref<1x1x128xf32, #tpu.memory_space<vmem>>, %arg5: memref<1x1x1xf32, #tpu.memory_space<vmem>>, %arg6: memref<128x256xbf16, #tpu.memory_space<vmem>>, %arg7: memref<1x256xf32, #tpu.memory_space<vmem>>, %arg8: memref<256x128xbf16, #tpu.memory_space<vmem>>, %arg9: memref<1x128xf32, #tpu.memory_space<vmem>>, %arg10: memref<128x128xbf16, #tpu.memory_space<vmem>>, %arg11: memref<1x128xf32, #tpu.memory_space<vmem>>, %arg12: memref<128x128xbf16, #tpu.memory_space<vmem>>, %arg13: memref<1x128xf32, #tpu.memory_space<vmem>>, %arg14: memref<128x128xbf16, #tpu.memory_space<vmem>>, %arg15: memref<1x128xf32, #tpu.memory_space<vmem>>, %arg16: memref<1x1x128xf32, #tpu.memory_space<vmem>>, %arg17: memref<3x128xf32, #tpu.memory_space<vmem>>) attributes {dimension_semantics = [#tpu.dimension_semantics<parallel>], iteration_bounds = array<i64: 2>, scalar_prefetch = 0 : i64, scratch_operands = 1 : i64, tpu.core_type = #tpu.core_type<tc>, window_params = [{transform_indices = @transform_0, window_bounds = array<i64: 1, 3, 128>}, {pipeline_mode = #tpu.pipeline_mode<synchronous>, transform_indices = @transform_1, window_bounds = array<i64: 4, 32, 128>}, {pipeline_mode = #tpu.pipeline_mode<synchronous>, transform_indices = @transform_2, window_bounds = array<i64: 4, 128, 32>}, {transform_indices = @transform_3, window_bounds = array<i64: 1, 1, 128>}, {transform_indices = @transform_4, window_bounds = array<i64: 1, 1, 1>}, {pipeline_mode = #tpu.pipeline_mode<synchronous>, transform_indices = @transform_5, window_bounds = array<i64: 128, 256>}, {pipeline_mode = #tpu.pipeline_mode<synchronous>, transform_indices = @transform_6, window_bounds = array<i64: 1, 256>}, {pipeline_mode = #tpu.pipeline_mode<synchronous>, transform_indices = @transform_7, window_bounds = array<i64: 256, 128>}, {pipeline_mode = #tpu.pipeline_mode<synchronous>, transform_indices = @transform_8, window_bounds = array<i64: 1, 128>}, {pipeline_mode = #tpu.pipeline_mode<synchronous>, transform_indices = @transform_9, window_bounds = array<i64: 128, 128>}, {pipeline_mode = #tpu.pipeline_mode<synchronous>, transform_indices = @transform_10, window_bounds = array<i64: 1, 128>}, {pipeline_mode = #tpu.pipeline_mode<synchronous>, transform_indices = @transform_11, window_bounds = array<i64: 128, 128>}, {pipeline_mode = #tpu.pipeline_mode<synchronous>, transform_indices = @transform_12, window_bounds = array<i64: 1, 128>}, {pipeline_mode = #tpu.pipeline_mode<synchronous>, transform_indices = @transform_13, window_bounds = array<i64: 128, 128>}, {pipeline_mode = #tpu.pipeline_mode<synchronous>, transform_indices = @transform_14, window_bounds = array<i64: 1, 128>}, {transform_indices = @transform_15, window_bounds = array<i64: 1, 1, 128>}]} {
    %c0 = arith.constant 0 : index
    %c0_0 = arith.constant 0 : index
    %c0_1 = arith.constant 0 : index
    %0 = vector.load %arg1[%c0, %c0_0, %c0_1] : memref<1x3x128xbf16, #tpu.memory_space<vmem>>, vector<1x3x128xbf16>
    %1 = vector.shape_cast %0 : vector<1x3x128xbf16> to vector<3x128xbf16>
    %c0_2 = arith.constant 0 : index
    %c0_3 = arith.constant 0 : index
    %2 = vector.load %arg6[%c0_2, %c0_3] : memref<128x256xbf16, #tpu.memory_space<vmem>>, vector<128x256xbf16>
    %cst = arith.constant dense<0.000000e+00> : vector<3x256xf32>
    %3 = tpu.matmul %1, %2, %cst {dimension_numbers = #tpu.dot_dimension_numbers<[1], [0], [0], [1], [0, 0, 1, 1], [], []>} : vector<3x128xbf16>, vector<128x256xbf16>, vector<3x256xf32> -> vector<3x256xf32>
    %c0_4 = arith.constant 0 : index
    %c0_5 = arith.constant 0 : index
    %4 = vector.load %arg7[%c0_4, %c0_5] : memref<1x256xf32, #tpu.memory_space<vmem>>, vector<1x256xf32>
    %5 = vector.broadcast %4 : vector<1x256xf32> to vector<3x256xf32>
    %6 = arith.addf %3, %5 : vector<3x256xf32>
    %cst_6 = arith.constant 0.000000e+00 : f32
    %7 = vector.broadcast %cst_6 : f32 to vector<3x256xf32>
    %8 = arith.maximumf %6, %7 : vector<3x256xf32>
    %9 = arith.truncf %8 : vector<3x256xf32> to vector<3x256xbf16>
    %c0_7 = arith.constant 0 : index
    %c0_8 = arith.constant 0 : index
    %10 = vector.load %arg8[%c0_7, %c0_8] : memref<256x128xbf16, #tpu.memory_space<vmem>>, vector<256x128xbf16>
    %cst_9 = arith.constant dense<0.000000e+00> : vector<3x128xf32>
    %11 = tpu.matmul %9, %10, %cst_9 {dimension_numbers = #tpu.dot_dimension_numbers<[1], [0], [0], [1], [0, 0, 1, 1], [], []>} : vector<3x256xbf16>, vector<256x128xbf16>, vector<3x128xf32> -> vector<3x128xf32>
    %c0_10 = arith.constant 0 : index
    %c0_11 = arith.constant 0 : index
    %12 = vector.load %arg9[%c0_10, %c0_11] : memref<1x128xf32, #tpu.memory_space<vmem>>, vector<1x128xf32>
    %13 = vector.broadcast %12 : vector<1x128xf32> to vector<3x128xf32>
    %14 = arith.addf %11, %13 : vector<3x128xf32>
    %15 = arith.truncf %14 : vector<3x128xf32> to vector<3x128xbf16>
    %c0_12 = arith.constant 0 : index
    %c0_13 = arith.constant 0 : index
    %16 = vector.load %arg10[%c0_12, %c0_13] : memref<128x128xbf16, #tpu.memory_space<vmem>>, vector<128x128xbf16>
    %cst_14 = arith.constant dense<0.000000e+00> : vector<3x128xf32>
    %17 = tpu.matmul %15, %16, %cst_14 {dimension_numbers = #tpu.dot_dimension_numbers<[1], [0], [0], [1], [0, 0, 1, 1], [], []>} : vector<3x128xbf16>, vector<128x128xbf16>, vector<3x128xf32> -> vector<3x128xf32>
    %c0_15 = arith.constant 0 : index
    %c0_16 = arith.constant 0 : index
    %18 = vector.load %arg11[%c0_15, %c0_16] : memref<1x128xf32, #tpu.memory_space<vmem>>, vector<1x128xf32>
    %19 = vector.broadcast %18 : vector<1x128xf32> to vector<3x128xf32>
    %20 = arith.addf %17, %19 : vector<3x128xf32>
    %21 = arith.truncf %20 : vector<3x128xf32> to vector<3x128xbf16>
    %22 = vector.extract_strided_slice %21 {offsets = [0, 0], sizes = [3, 32], strides = [1, 1]} : vector<3x128xbf16> to vector<3x32xbf16>
    %c0_17 = arith.constant 0 : index
    %c0_18 = arith.constant 0 : index
    %c0_19 = arith.constant 0 : index
    %23 = vector.load %arg2[%c0_17, %c0_18, %c0_19] : memref<4x32x128xbf16, #tpu.memory_space<vmem>>, vector<1x32x128xbf16>
    %24 = vector.shape_cast %23 : vector<1x32x128xbf16> to vector<32x128xbf16>
    %cst_20 = arith.constant dense<0.000000e+00> : vector<3x128xf32>
    %25 = tpu.matmul %22, %24, %cst_20 {dimension_numbers = #tpu.dot_dimension_numbers<[1], [0], [0], [1], [0, 0, 1, 1], [], []>} : vector<3x32xbf16>, vector<32x128xbf16>, vector<3x128xf32> -> vector<3x128xf32>
    %cst_21 = arith.constant dense<0xFF800000> : vector<3xf32>
    %26 = vector.multi_reduction <maximumf>, %25, %cst_21 [1] : vector<3x128xf32> to vector<3xf32>
    %27 = vector.shape_cast %26 : vector<3xf32> to vector<3x1xf32>
    %28 = vector.broadcast %27 : vector<3x1xf32> to vector<3x128xf32>
    %29 = arith.subf %25, %28 : vector<3x128xf32>
    %30 = math.exp %29 : vector<3x128xf32>
    %cst_22 = arith.constant dense<0.000000e+00> : vector<3xf32>
    %31 = vector.multi_reduction <add>, %30, %cst_22 [1] : vector<3x128xf32> to vector<3xf32>
    %32 = vector.shape_cast %31 : vector<3xf32> to vector<3x1xf32>
    %33 = vector.broadcast %32 : vector<3x1xf32> to vector<3x128xf32>
    %34 = arith.divf %30, %33 : vector<3x128xf32>
    %35 = arith.truncf %34 : vector<3x128xf32> to vector<3x128xbf16>
    %c0_23 = arith.constant 0 : index
    %c0_24 = arith.constant 0 : index
    %c0_25 = arith.constant 0 : index
    %36 = vector.load %arg3[%c0_23, %c0_24, %c0_25] : memref<4x128x32xbf16, #tpu.memory_space<vmem>>, vector<1x128x32xbf16>
    %37 = vector.shape_cast %36 : vector<1x128x32xbf16> to vector<128x32xbf16>
    %cst_26 = arith.constant dense<0.000000e+00> : vector<3x32xf32>
    %38 = tpu.matmul %35, %37, %cst_26 {dimension_numbers = #tpu.dot_dimension_numbers<[1], [0], [0], [1], [0, 0, 1, 1], [], []>} : vector<3x128xbf16>, vector<128x32xbf16>, vector<3x32xf32> -> vector<3x32xf32>
    %c0_27 = arith.constant 0 : index
    %c0_28 = arith.constant 0 : index
    %39 = vector.load %arg17[%c0_27, %c0_28] : memref<3x128xf32, #tpu.memory_space<vmem>>, vector<3x32xf32>
    tpu.vector_store %arg17[%c0_27, %c0_28], %38 {strides = array<i32>} : memref<3x128xf32, #tpu.memory_space<vmem>>, vector<3x32xf32>,
    %40 = vector.extract_strided_slice %21 {offsets = [0, 32], sizes = [3, 32], strides = [1, 1]} : vector<3x128xbf16> to vector<3x32xbf16>
    %c1 = arith.constant 1 : index
    %c0_29 = arith.constant 0 : index
    %c0_30 = arith.constant 0 : index
    %41 = vector.load %arg2[%c1, %c0_29, %c0_30] : memref<4x32x128xbf16, #tpu.memory_space<vmem>>, vector<1x32x128xbf16>
    %42 = vector.shape_cast %41 : vector<1x32x128xbf16> to vector<32x128xbf16>
    %cst_31 = arith.constant dense<0.000000e+00> : vector<3x128xf32>
    %43 = tpu.matmul %40, %42, %cst_31 {dimension_numbers = #tpu.dot_dimension_numbers<[1], [0], [0], [1], [0, 0, 1, 1], [], []>} : vector<3x32xbf16>, vector<32x128xbf16>, vector<3x128xf32> -> vector<3x128xf32>
    %cst_32 = arith.constant dense<0xFF800000> : vector<3xf32>
    %44 = vector.multi_reduction <maximumf>, %43, %cst_32 [1] : vector<3x128xf32> to vector<3xf32>
    %45 = vector.shape_cast %44 : vector<3xf32> to vector<3x1xf32>
    %46 = vector.broadcast %45 : vector<3x1xf32> to vector<3x128xf32>
    %47 = arith.subf %43, %46 : vector<3x128xf32>
    %48 = math.exp %47 : vector<3x128xf32>
    %cst_33 = arith.constant dense<0.000000e+00> : vector<3xf32>
    %49 = vector.multi_reduction <add>, %48, %cst_33 [1] : vector<3x128xf32> to vector<3xf32>
    %50 = vector.shape_cast %49 : vector<3xf32> to vector<3x1xf32>
    %51 = vector.broadcast %50 : vector<3x1xf32> to vector<3x128xf32>
    %52 = arith.divf %48, %51 : vector<3x128xf32>
    %53 = arith.truncf %52 : vector<3x128xf32> to vector<3x128xbf16>
    %c1_34 = arith.constant 1 : index
    %c0_35 = arith.constant 0 : index
    %c0_36 = arith.constant 0 : index
    %54 = vector.load %arg3[%c1_34, %c0_35, %c0_36] : memref<4x128x32xbf16, #tpu.memory_space<vmem>>, vector<1x128x32xbf16>
    %55 = vector.shape_cast %54 : vector<1x128x32xbf16> to vector<128x32xbf16>
    %cst_37 = arith.constant dense<0.000000e+00> : vector<3x32xf32>
    %56 = tpu.matmul %53, %55, %cst_37 {dimension_numbers = #tpu.dot_dimension_numbers<[1], [0], [0], [1], [0, 0, 1, 1], [], []>} : vector<3x128xbf16>, vector<128x32xbf16>, vector<3x32xf32> -> vector<3x32xf32>
    %c0_38 = arith.constant 0 : index
    %c32 = arith.constant 32 : index
    %57 = vector.load %arg17[%c0_38, %c32] : memref<3x128xf32, #tpu.memory_space<vmem>>, vector<3x32xf32>
    tpu.vector_store %arg17[%c0_38, %c32], %56 {strides = array<i32>} : memref<3x128xf32, #tpu.memory_space<vmem>>, vector<3x32xf32>,
    %58 = vector.extract_strided_slice %21 {offsets = [0, 64], sizes = [3, 32], strides = [1, 1]} : vector<3x128xbf16> to vector<3x32xbf16>
    %c2 = arith.constant 2 : index
    %c0_39 = arith.constant 0 : index
    %c0_40 = arith.constant 0 : index
    %59 = vector.load %arg2[%c2, %c0_39, %c0_40] : memref<4x32x128xbf16, #tpu.memory_space<vmem>>, vector<1x32x128xbf16>
    %60 = vector.shape_cast %59 : vector<1x32x128xbf16> to vector<32x128xbf16>
    %cst_41 = arith.constant dense<0.000000e+00> : vector<3x128xf32>
    %61 = tpu.matmul %58, %60, %cst_41 {dimension_numbers = #tpu.dot_dimension_numbers<[1], [0], [0], [1], [0, 0, 1, 1], [], []>} : vector<3x32xbf16>, vector<32x128xbf16>, vector<3x128xf32> -> vector<3x128xf32>
    %cst_42 = arith.constant dense<0xFF800000> : vector<3xf32>
    %62 = vector.multi_reduction <maximumf>, %61, %cst_42 [1] : vector<3x128xf32> to vector<3xf32>
    %63 = vector.shape_cast %62 : vector<3xf32> to vector<3x1xf32>
    %64 = vector.broadcast %63 : vector<3x1xf32> to vector<3x128xf32>
    %65 = arith.subf %61, %64 : vector<3x128xf32>
    %66 = math.exp %65 : vector<3x128xf32>
    %cst_43 = arith.constant dense<0.000000e+00> : vector<3xf32>
    %67 = vector.multi_reduction <add>, %66, %cst_43 [1] : vector<3x128xf32> to vector<3xf32>
    %68 = vector.shape_cast %67 : vector<3xf32> to vector<3x1xf32>
    %69 = vector.broadcast %68 : vector<3x1xf32> to vector<3x128xf32>
    %70 = arith.divf %66, %69 : vector<3x128xf32>
    %71 = arith.truncf %70 : vector<3x128xf32> to vector<3x128xbf16>
    %c2_44 = arith.constant 2 : index
    %c0_45 = arith.constant 0 : index
    %c0_46 = arith.constant 0 : index
    %72 = vector.load %arg3[%c2_44, %c0_45, %c0_46] : memref<4x128x32xbf16, #tpu.memory_space<vmem>>, vector<1x128x32xbf16>
    %73 = vector.shape_cast %72 : vector<1x128x32xbf16> to vector<128x32xbf16>
    %cst_47 = arith.constant dense<0.000000e+00> : vector<3x32xf32>
    %74 = tpu.matmul %71, %73, %cst_47 {dimension_numbers = #tpu.dot_dimension_numbers<[1], [0], [0], [1], [0, 0, 1, 1], [], []>} : vector<3x128xbf16>, vector<128x32xbf16>, vector<3x32xf32> -> vector<3x32xf32>
    %c0_48 = arith.constant 0 : index
    %c64 = arith.constant 64 : index
    %75 = vector.load %arg17[%c0_48, %c64] : memref<3x128xf32, #tpu.memory_space<vmem>>, vector<3x32xf32>
    tpu.vector_store %arg17[%c0_48, %c64], %74 {strides = array<i32>} : memref<3x128xf32, #tpu.memory_space<vmem>>, vector<3x32xf32>,
    %76 = vector.extract_strided_slice %21 {offsets = [0, 96], sizes = [3, 32], strides = [1, 1]} : vector<3x128xbf16> to vector<3x32xbf16>
    %c3 = arith.constant 3 : index
    %c0_49 = arith.constant 0 : index
    %c0_50 = arith.constant 0 : index
    %77 = vector.load %arg2[%c3, %c0_49, %c0_50] : memref<4x32x128xbf16, #tpu.memory_space<vmem>>, vector<1x32x128xbf16>
    %78 = vector.shape_cast %77 : vector<1x32x128xbf16> to vector<32x128xbf16>
    %cst_51 = arith.constant dense<0.000000e+00> : vector<3x128xf32>
    %79 = tpu.matmul %76, %78, %cst_51 {dimension_numbers = #tpu.dot_dimension_numbers<[1], [0], [0], [1], [0, 0, 1, 1], [], []>} : vector<3x32xbf16>, vector<32x128xbf16>, vector<3x128xf32> -> vector<3x128xf32>
    %cst_52 = arith.constant dense<0xFF800000> : vector<3xf32>
    %80 = vector.multi_reduction <maximumf>, %79, %cst_52 [1] : vector<3x128xf32> to vector<3xf32>
    %81 = vector.shape_cast %80 : vector<3xf32> to vector<3x1xf32>
    %82 = vector.broadcast %81 : vector<3x1xf32> to vector<3x128xf32>
    %83 = arith.subf %79, %82 : vector<3x128xf32>
    %84 = math.exp %83 : vector<3x128xf32>
    %cst_53 = arith.constant dense<0.000000e+00> : vector<3xf32>
    %85 = vector.multi_reduction <add>, %84, %cst_53 [1] : vector<3x128xf32> to vector<3xf32>
    %86 = vector.shape_cast %85 : vector<3xf32> to vector<3x1xf32>
    %87 = vector.broadcast %86 : vector<3x1xf32> to vector<3x128xf32>
    %88 = arith.divf %84, %87 : vector<3x128xf32>
    %89 = arith.truncf %88 : vector<3x128xf32> to vector<3x128xbf16>
    %c3_54 = arith.constant 3 : index
    %c0_55 = arith.constant 0 : index
    %c0_56 = arith.constant 0 : index
    %90 = vector.load %arg3[%c3_54, %c0_55, %c0_56] : memref<4x128x32xbf16, #tpu.memory_space<vmem>>, vector<1x128x32xbf16>
    %91 = vector.shape_cast %90 : vector<1x128x32xbf16> to vector<128x32xbf16>
    %cst_57 = arith.constant dense<0.000000e+00> : vector<3x32xf32>
    %92 = tpu.matmul %89, %91, %cst_57 {dimension_numbers = #tpu.dot_dimension_numbers<[1], [0], [0], [1], [0, 0, 1, 1], [], []>} : vector<3x128xbf16>, vector<128x32xbf16>, vector<3x32xf32> -> vector<3x32xf32>
    %c0_58 = arith.constant 0 : index
    %c96 = arith.constant 96 : index
    %93 = vector.load %arg17[%c0_58, %c96] : memref<3x128xf32, #tpu.memory_space<vmem>>, vector<3x32xf32>
    tpu.vector_store %arg17[%c0_58, %c96], %92 {strides = array<i32>} : memref<3x128xf32, #tpu.memory_space<vmem>>, vector<3x32xf32>,
    %c0_59 = arith.constant 0 : index
    %c0_60 = arith.constant 0 : index
    %94 = vector.load %arg17[%c0_59, %c0_60] : memref<3x128xf32, #tpu.memory_space<vmem>>, vector<3x128xf32>
    %95 = arith.truncf %94 : vector<3x128xf32> to vector<3x128xbf16>
    %c0_61 = arith.constant 0 : index
    %c0_62 = arith.constant 0 : index
    %96 = vector.load %arg12[%c0_61, %c0_62] : memref<128x128xbf16, #tpu.memory_space<vmem>>, vector<128x128xbf16>
    %cst_63 = arith.constant dense<0.000000e+00> : vector<3x128xf32>
    %97 = tpu.matmul %95, %96, %cst_63 {dimension_numbers = #tpu.dot_dimension_numbers<[1], [0], [0], [1], [0, 0, 1, 1], [], []>} : vector<3x128xbf16>, vector<128x128xbf16>, vector<3x128xf32> -> vector<3x128xf32>
    %c0_64 = arith.constant 0 : index
    %c0_65 = arith.constant 0 : index
    %98 = vector.load %arg13[%c0_64, %c0_65] : memref<1x128xf32, #tpu.memory_space<vmem>>, vector<1x128xf32>
    %99 = vector.broadcast %98 : vector<1x128xf32> to vector<3x128xf32>
    %100 = arith.addf %97, %99 : vector<3x128xf32>
    %cst_66 = arith.constant dense<0.000000e+00> : vector<128xf32>
    %101 = vector.multi_reduction <add>, %100, %cst_66 [0] : vector<3x128xf32> to vector<128xf32>
    %102 = vector.shape_cast %101 : vector<128xf32> to vector<1x128xf32>
    %c0_67 = arith.constant 0 : index
    %c0_68 = arith.constant 0 : index
    %c0_69 = arith.constant 0 : index
    %103 = vector.load %arg4[%c0_67, %c0_68, %c0_69] : memref<1x1x128xf32, #tpu.memory_space<vmem>>, vector<1x1x128xf32>
    %104 = vector.shape_cast %103 : vector<1x1x128xf32> to vector<1x128xf32>
    %105 = arith.addf %102, %104 : vector<1x128xf32>
    %c0_70 = arith.constant 0 : index
    %c0_71 = arith.constant 0 : index
    %c0_72 = arith.constant 0 : index
    %106 = vector.load %arg5[%c0_70, %c0_71, %c0_72] : memref<1x1x1xf32, #tpu.memory_space<vmem>>, vector<1x1x1xf32>
    %107 = vector.shape_cast %106 : vector<1x1x1xf32> to vector<1x1xf32>
    %108 = vector.broadcast %107 : vector<1x1xf32> to vector<1x128xf32>
    %109 = arith.divf %105, %108 : vector<1x128xf32>
    %110 = arith.truncf %109 : vector<1x128xf32> to vector<1x128xbf16>
    %c0_73 = arith.constant 0 : index
    %c0_74 = arith.constant 0 : index
    %111 = vector.load %arg14[%c0_73, %c0_74] : memref<128x128xbf16, #tpu.memory_space<vmem>>, vector<128x128xbf16>
    %cst_75 = arith.constant dense<0.000000e+00> : vector<1x128xf32>
    %112 = tpu.matmul %110, %111, %cst_75 {dimension_numbers = #tpu.dot_dimension_numbers<[1], [0], [0], [1], [0, 0, 1, 1], [], []>} : vector<1x128xbf16>, vector<128x128xbf16>, vector<1x128xf32> -> vector<1x128xf32>
    %c0_76 = arith.constant 0 : index
    %c0_77 = arith.constant 0 : index
    %113 = vector.load %arg15[%c0_76, %c0_77] : memref<1x128xf32, #tpu.memory_space<vmem>>, vector<1x128xf32>
    %114 = arith.addf %112, %113 : vector<1x128xf32>
    %c0_78 = arith.constant 0 : index
    %c0_79 = arith.constant 0 : index
    %c0_80 = arith.constant 0 : index
    %115 = vector.load %arg16[%c0_78, %c0_79, %c0_80] : memref<1x1x128xf32, #tpu.memory_space<vmem>>, vector<1x1x128xf32>
    %116 = vector.shape_cast %115 : vector<1x1x128xf32> to vector<1x128xf32>
    %117 = vector.shape_cast %114 : vector<1x128xf32> to vector<1x1x128xf32>
    tpu.vector_store %arg16[%c0_78, %c0_79, %c0_80], %117 {strides = array<i32>} : memref<1x1x128xf32, #tpu.memory_space<vmem>>, vector<1x1x128xf32>,
    return
  }
  func.func @transform_0(%arg0: i32) -> (i32, i32, i32) {
    %c0_i32 = arith.constant 0 : i32
    %c0_i32_0 = arith.constant 0 : i32
    %c0_i32_1 = arith.constant 0 : i32
    return %arg0, %c0_i32, %c0_i32_0 : i32, i32, i32
  }
  func.func @transform_1(%arg0: i32) -> (i32, i32, i32) {
    %c0_i32 = arith.constant 0 : i32
    %c0_i32_0 = arith.constant 0 : i32
    %c0_i32_1 = arith.constant 0 : i32
    %c0_i32_2 = arith.constant 0 : i32
    return %c0_i32, %c0_i32_0, %c0_i32_1 : i32, i32, i32
  }
  func.func @transform_2(%arg0: i32) -> (i32, i32, i32) {
    %c0_i32 = arith.constant 0 : i32
    %c0_i32_0 = arith.constant 0 : i32
    %c0_i32_1 = arith.constant 0 : i32
    %c0_i32_2 = arith.constant 0 : i32
    return %c0_i32, %c0_i32_0, %c0_i32_1 : i32, i32, i32
  }
  func.func @transform_3(%arg0: i32) -> (i32, i32, i32) {
    %c0_i32 = arith.constant 0 : i32
    %c0_i32_0 = arith.constant 0 : i32
    %c0_i32_1 = arith.constant 0 : i32
    return %arg0, %c0_i32, %c0_i32_0 : i32, i32, i32
  }
  func.func @transform_4(%arg0: i32) -> (i32, i32, i32) {
    %c0_i32 = arith.constant 0 : i32
    %c0_i32_0 = arith.constant 0 : i32
    %c0_i32_1 = arith.constant 0 : i32
    return %arg0, %c0_i32, %c0_i32_0 : i32, i32, i32
  }
  func.func @transform_5(%arg0: i32) -> (i32, i32) {
    %c0_i32 = arith.constant 0 : i32
    %c0_i32_0 = arith.constant 0 : i32
    %c0_i32_1 = arith.constant 0 : i32
    return %c0_i32, %c0_i32_0 : i32, i32
  }
  func.func @transform_6(%arg0: i32) -> (i32, i32) {
    %c0_i32 = arith.constant 0 : i32
    %c0_i32_0 = arith.constant 0 : i32
    %c0_i32_1 = arith.constant 0 : i32
    return %c0_i32, %c0_i32_0 : i32, i32
  }
  func.func @transform_7(%arg0: i32) -> (i32, i32) {
    %c0_i32 = arith.constant 0 : i32
    %c0_i32_0 = arith.constant 0 : i32
    %c0_i32_1 = arith.constant 0 : i32
    return %c0_i32, %c0_i32_0 : i32, i32
  }
  func.func @transform_8(%arg0: i32) -> (i32, i32) {
    %c0_i32 = arith.constant 0 : i32
    %c0_i32_0 = arith.constant 0 : i32
    %c0_i32_1 = arith.constant 0 : i32
    return %c0_i32, %c0_i32_0 : i32, i32
  }
  func.func @transform_9(%arg0: i32) -> (i32, i32) {
    %c0_i32 = arith.constant 0 : i32
    %c0_i32_0 = arith.constant 0 : i32
    %c0_i32_1 = arith.constant 0 : i32
    return %c0_i32, %c0_i32_0 : i32, i32
  }
  func.func @transform_10(%arg0: i32) -> (i32, i32) {
    %c0_i32 = arith.constant 0 : i32
    %c0_i32_0 = arith.constant 0 : i32
    %c0_i32_1 = arith.constant 0 : i32
    return %c0_i32, %c0_i32_0 : i32, i32
  }
  func.func @transform_11(%arg0: i32) -> (i32, i32) {
    %c0_i32 = arith.constant 0 : i32
    %c0_i32_0 = arith.constant 0 : i32
    %c0_i32_1 = arith.constant 0 : i32
    return %c0_i32, %c0_i32_0 : i32, i32
  }
  func.func @transform_12(%arg0: i32) -> (i32, i32) {
    %c0_i32 = arith.constant 0 : i32
    %c0_i32_0 = arith.constant 0 : i32
    %c0_i32_1 = arith.constant 0 : i32
    return %c0_i32, %c0_i32_0 : i32, i32
  }
  func.func @transform_13(%arg0: i32) -> (i32, i32) {
    %c0_i32 = arith.constant 0 : i32
    %c0_i32_0 = arith.constant 0 : i32
    %c0_i32_1 = arith.constant 0 : i32
    return %c0_i32, %c0_i32_0 : i32, i32
  }
  func.func @transform_14(%arg0: i32) -> (i32, i32) {
    %c0_i32 = arith.constant 0 : i32
    %c0_i32_0 = arith.constant 0 : i32
    %c0_i32_1 = arith.constant 0 : i32
    return %c0_i32, %c0_i32_0 : i32, i32
  }
  func.func @transform_15(%arg0: i32) -> (i32, i32, i32) {
    %c0_i32 = arith.constant 0 : i32
    %c0_i32_0 = arith.constant 0 : i32
    %c0_i32_1 = arith.constant 0 : i32
    return %arg0, %c0_i32, %c0_i32_0 : i32, i32, i32
  }
}

</mosaic_0001>

<llo_original>
// kernel: tpu_custom_call.1
$region0: #{tpu_custom_call.1}
  #allocation0 [shape = 'u32[]', space=smem, size = 0x4, offset = 0x4, fixed_abs, tag = 'smem constant byte address 0x4 - core index']
  #allocation1 [shape = 'u32[144,128]{1,0:T(1,128)}', space=vmem, size = 0x12000, scoped, tag = 'internal scratch']
  #allocation2 [shape = 'f32[3,128]{1,0:T(4,128)}', space=vmem, size = 0x800, scoped, tag = 'scratch operand']
  %s0 = inlined_call_operand.vmem [shape: bf16[2,3,128], index: 0, kind: input, shape index: {}]
  %s1 = inlined_call_operand.vmem [shape: bf16[4,32,128], index: 1, kind: input, shape index: {}]
  %s2 = inlined_call_operand.vmem [shape: bf16[4,128,32], index: 2, kind: input, shape index: {}]
  %s3 = inlined_call_operand.vmem [shape: f32[2,1,128], index: 3, kind: input, shape index: {}]
  %s4 = inlined_call_operand.vmem [shape: f32[2,1,1], index: 4, kind: input, shape index: {}]
  %s5 = inlined_call_operand.vmem [shape: bf16[128,256], index: 5, kind: input, shape index: {}]
  %s6 = inlined_call_operand.vmem [shape: f32[1,256], index: 6, kind: input, shape index: {}]
  %s7 = inlined_call_operand.vmem [shape: bf16[256,128], index: 7, kind: input, shape index: {}]
  %s8 = inlined_call_operand.vmem [shape: f32[1,128], index: 8, kind: input, shape index: {}]
  %s9 = inlined_call_operand.hbm [shape: bf16[128,128], index: 9, kind: input, shape index: {}]
  %s10 = inlined_call_operand.vmem [shape: f32[1,128], index: 10, kind: input, shape index: {}]
  %s11 = inlined_call_operand.hbm [shape: bf16[128,128], index: 11, kind: input, shape index: {}]
  %s12 = inlined_call_operand.vmem [shape: f32[1,128], index: 12, kind: input, shape index: {}]
  %s13 = inlined_call_operand.hbm [shape: bf16[128,128], index: 13, kind: input, shape index: {}]
  %s14 = inlined_call_operand.vmem [shape: f32[1,128], index: 14, kind: input, shape index: {}]
  %s15 = inlined_call_operand.hbm [shape: f32[2,1,128], index: 15, kind: output, shape index: {}]
  %s16 = sld [smem:[#allocation0]]
  $region105: #{tpu_custom_call.1} parent=0
    _
  %s18 = ssub.s32 1, %s16
  %s19 = scalar_select 0, %s18, %s16
  $region1: #{tpu_custom_call.1} parent=0
    #allocation3 [shape = 'u8[32768]{0}', space=vmem, size = 0x8000, scoped, tag = 'input window, operand 9, single buffered']
    #allocation4 [shape = 's32[2]{0}', space=sflag, size = 0x8, scoped, tag = 'scoped memory for tpu_custom_call.1']
    #allocation5 [shape = 's32[2]{0}', space=sflag, size = 0x8, scoped, tag = 'scoped memory for tpu_custom_call.1']
    #allocation6 [shape = 'u8[32768]{0}', space=vmem, size = 0x8000, scoped, tag = 'input window, operand 11, single buffered']
    #allocation7 [shape = 's32[1]{0}', space=sflag, size = 0x4, scoped, tag = 'scoped memory for tpu_custom_call.1']
    #allocation8 [shape = 'u8[32768]{0}', space=vmem, size = 0x8000, scoped, tag = 'input window, operand 13, single buffered']
    #allocation9 [shape = 'u8[1024]{0}', space=vmem, size = 0x400, scoped, tag = 'output window, operand 0']
    %20 = vsyncpa [#allocation4], 0
    %21 = vsyncpa [#allocation7], 0
    %22 = vsyncpa [#allocation5], 0
    %s23 = scalar_lea.sflag [#allocation5], 1
    %24 = vsyncpa %s23, 0
    loop: start=0, step=1, limit=4
    $region2: #{tpu_custom_call.1} parent=1 // loop_pre_header
      _
    $region3: #{tpu_custom_call.1} parent=1 // loop_header
      %s26 = sphi 0, %s30
      %p27 = scmp.ge.s32.totalorder %s26, 4
      %s36 = sphi 0, %s38
      %s39 = sphi 0, %s36
      %s40 = sphi 0, %s39
      %s56 = sphi 0, %s40
      %s60 = sphi 0, %s60
      %s62 = sphi 0, %s60
      %s63 = sphi 0, %s62
      %s77 = sphi 0, %s63
      %s81 = sphi 0, %s81
      %s83 = sphi 0, %s81
      %s84 = sphi 0, %s83
      %s98 = sphi 0, %s84
      %s104 = sphi 0, %s106
      %s107 = sphi 0, %s104
      %s108 = sphi 0, %s107
      %s124 = sphi 0, %s108
      %s130 = sphi 0, %s132
      %s133 = sphi 0, %s130
      %s134 = sphi 0, %s133
      %s150 = sphi 0, %s134
      %s154 = sphi 0, %s154
      %s156 = sphi 0, %s154
      %s157 = sphi 0, %s156
      %s171 = sphi 0, %s157
      %s175 = sphi 0, %s175
      %s177 = sphi 0, %s175
      %s178 = sphi 0, %s177
      %s192 = sphi 0, %s178
      %s196 = sphi 0, %s196
      %s198 = sphi 0, %s196
      %s199 = sphi 0, %s198
      %s213 = sphi 0, %s199
      %s217 = sphi 0, %s217
      %s219 = sphi 0, %s217
      %s220 = sphi 0, %s219
      %s234 = sphi 0, %s220
      %s238 = sphi 0, %s238
      %s240 = sphi 0, %s238
      %s241 = sphi 0, %s240
      %s255 = sphi 0, %s241
      %s259 = sphi 0, %s259
      %s261 = sphi 0, %s259
      %s262 = sphi 0, %s261
      %s276 = sphi 0, %s262
      %s280 = sphi 0, %s280
      %s282 = sphi 0, %s280
      %s283 = sphi 0, %s282
      %s297 = sphi 0, %s283
      %s301 = sphi 0, %s301
      %s303 = sphi 0, %s301
      %s304 = sphi 0, %s303
      %s318 = sphi 0, %s304
      %s322 = sphi 0, %s322
      %s324 = sphi 0, %s322
      %s325 = sphi 0, %s324
      %s339 = sphi 0, %s325
      %s343 = sphi 0, %s343
      %s345 = sphi 0, %s343
      %s346 = sphi 0, %s345
      %s360 = sphi 0, %s346
      %s366 = sphi 0, %s368
      %s369 = sphi 0, %s366
      %s370 = sphi 0, %s369
      %s386 = sphi 0, %s370
    $region4: #{tpu_custom_call.1} parent=1 // loop_header_branch
      %29 = sbr.rel (%p27) target = $region8
    $region5: #{tpu_custom_call.1} parent=1 // loop_body
      %s31 = ssub.s32 %s26, 1
      %s32 = ssub.s32 %s26, 2
      %s33 = sadd.s32 %s26, 1
      %s34 = ssub.s32 %s26, %s33
      %p35 = scmp.eq.s32.totalorder %s34, 0
      %s37 = sadd.s32 %s36, 1
      %s38 = scalar_select %p35, %s36, %s37
      %p41 = pneg %p35
      %p42 = scmp.eq.s32.totalorder %s26, 1
      %p43 = por %p41, %p42
      %p44 = scmp.ne.s32.totalorder %s36, %s39
      %p45 = scmp.eq.s32.totalorder %s26, 0
      %p46 = por %p44, %p45
      %p47 = scmp.ne.s32.totalorder %s36, %s39
      %p48 = scmp.eq.s32.totalorder %s31, 1
      %p49 = por %p47, %p48
      %p50 = scmp.ne.s32.totalorder %s39, %s40
      %p51 = scmp.eq.s32.totalorder %s31, 0
      %p52 = por %p50, %p51
      %p53 = scmp.ne.s32.totalorder %s39, %s40
      %p54 = scmp.eq.s32.totalorder %s32, 1
      %p55 = por %p53, %p54
      %p57 = scmp.ne.s32.totalorder %s40, %s56
      %p58 = scmp.eq.s32.totalorder %s32, 0
      %p59 = por %p57, %p58
      %s61 = sadd.s32 %s60, 1
      %p64 = scmp.eq.s32.totalorder %s26, 1
      %p65 = scmp.ne.s32.totalorder %s60, %s62
      %p66 = scmp.eq.s32.totalorder %s26, 0
      %p67 = por %p65, %p66
      %p68 = scmp.ne.s32.totalorder %s60, %s62
      %p69 = scmp.eq.s32.totalorder %s31, 1
      %p70 = por %p68, %p69
      %p71 = scmp.ne.s32.totalorder %s62, %s63
      %p72 = scmp.eq.s32.totalorder %s31, 0
      %p73 = por %p71, %p72
      %p74 = scmp.ne.s32.totalorder %s62, %s63
      %p75 = scmp.eq.s32.totalorder %s32, 1
      %p76 = por %p74, %p75
      %p78 = scmp.ne.s32.totalorder %s63, %s77
      %p79 = scmp.eq.s32.totalorder %s32, 0
      %p80 = por %p78, %p79
      %s82 = sadd.s32 %s81, 1
      %p85 = scmp.eq.s32.totalorder %s26, 1
      %p86 = scmp.ne.s32.totalorder %s81, %s83
      %p87 = scmp.eq.s32.totalorder %s26, 0
      %p88 = por %p86, %p87
      %p89 = scmp.ne.s32.totalorder %s81, %s83
      %p90 = scmp.eq.s32.totalorder %s31, 1
      %p91 = por %p89, %p90
      %p92 = scmp.ne.s32.totalorder %s83, %s84
      %p93 = scmp.eq.s32.totalorder %s31, 0
      %p94 = por %p92, %p93
      %p95 = scmp.ne.s32.totalorder %s83, %s84
      %p96 = scmp.eq.s32.totalorder %s32, 1
      %p97 = por %p95, %p96
      %p99 = scmp.ne.s32.totalorder %s84, %s98
      %p100 = scmp.eq.s32.totalorder %s32, 0
      %p101 = por %p99, %p100
      %s102 = ssub.s32 %s26, %s33
      %p103 = scmp.eq.s32.totalorder %s102, 0
      %s105 = sadd.s32 %s104, 1
      %s106 = scalar_select %p103, %s104, %s105
      %p109 = pneg %p103
      %p110 = scmp.eq.s32.totalorder %s26, 1
      %p111 = por %p109, %p110
      %p112 = scmp.ne.s32.totalorder %s104, %s107
      %p113 = scmp.eq.s32.totalorder %s26, 0
      %p114 = por %p112, %p113
      %p115 = scmp.ne.s32.totalorder %s104, %s107
      %p116 = scmp.eq.s32.totalorder %s31, 1
      %p117 = por %p115, %p116
      %p118 = scmp.ne.s32.totalorder %s107, %s108
      %p119 = scmp.eq.s32.totalorder %s31, 0
      %p120 = por %p118, %p119
      %p121 = scmp.ne.s32.totalorder %s107, %s108
      %p122 = scmp.eq.s32.totalorder %s32, 1
      %p123 = por %p121, %p122
      %p125 = scmp.ne.s32.totalorder %s108, %s124
      %p126 = scmp.eq.s32.totalorder %s32, 0
      %p127 = por %p125, %p126
      %s128 = ssub.s32 %s26, %s33
      %p129 = scmp.eq.s32.totalorder %s128, 0
      %s131 = sadd.s32 %s130, 1
      %s132 = scalar_select %p129, %s130, %s131
      %p135 = pneg %p129
      %p136 = scmp.eq.s32.totalorder %s26, 1
      %p137 = por %p135, %p136
      %p138 = scmp.ne.s32.totalorder %s130, %s133
      %p139 = scmp.eq.s32.totalorder %s26, 0
      %p140 = por %p138, %p139
      %p141 = scmp.ne.s32.totalorder %s130, %s133
      %p142 = scmp.eq.s32.totalorder %s31, 1
      %p143 = por %p141, %p142
      %p144 = scmp.ne.s32.totalorder %s133, %s134
      %p145 = scmp.eq.s32.totalorder %s31, 0
      %p146 = por %p144, %p145
      %p147 = scmp.ne.s32.totalorder %s133, %s134
      %p148 = scmp.eq.s32.totalorder %s32, 1
      %p149 = por %p147, %p148
      %p151 = scmp.ne.s32.totalorder %s134, %s150
      %p152 = scmp.eq.s32.totalorder %s32, 0
      %p153 = por %p151, %p152
      %s155 = sadd.s32 %s154, 1
      %p158 = scmp.eq.s32.totalorder %s26, 1
      %p159 = scmp.ne.s32.totalorder %s154, %s156
      %p160 = scmp.eq.s32.totalorder %s26, 0
      %p161 = por %p159, %p160
      %p162 = scmp.ne.s32.totalorder %s154, %s156
      %p163 = scmp.eq.s32.totalorder %s31, 1
      %p164 = por %p162, %p163
      %p165 = scmp.ne.s32.totalorder %s156, %s157
      %p166 = scmp.eq.s32.totalorder %s31, 0
      %p167 = por %p165, %p166
      %p168 = scmp.ne.s32.totalorder %s156, %s157
      %p169 = scmp.eq.s32.totalorder %s32, 1
      %p170 = por %p168, %p169
      %p172 = scmp.ne.s32.totalorder %s157, %s171
      %p173 = scmp.eq.s32.totalorder %s32, 0
      %p174 = por %p172, %p173
      %s176 = sadd.s32 %s175, 1
      %p179 = scmp.eq.s32.totalorder %s26, 1
      %p180 = scmp.ne.s32.totalorder %s175, %s177
      %p181 = scmp.eq.s32.totalorder %s26, 0
      %p182 = por %p180, %p181
      %p183 = scmp.ne.s32.totalorder %s175, %s177
      %p184 = scmp.eq.s32.totalorder %s31, 1
      %p185 = por %p183, %p184
      %p186 = scmp.ne.s32.totalorder %s177, %s178
      %p187 = scmp.eq.s32.totalorder %s31, 0
      %p188 = por %p186, %p187
      %p189 = scmp.ne.s32.totalorder %s177, %s178
      %p190 = scmp.eq.s32.totalorder %s32, 1
      %p191 = por %p189, %p190
      %p193 = scmp.ne.s32.totalorder %s178, %s192
      %p194 = scmp.eq.s32.totalorder %s32, 0
      %p195 = por %p193, %p194
      %s197 = sadd.s32 %s196, 1
      %p200 = scmp.eq.s32.totalorder %s26, 1
      %p201 = scmp.ne.s32.totalorder %s196, %s198
      %p202 = scmp.eq.s32.totalorder %s26, 0
      %p203 = por %p201, %p202
      %p204 = scmp.ne.s32.totalorder %s196, %s198
      %p205 = scmp.eq.s32.totalorder %s31, 1
      %p206 = por %p204, %p205
      %p207 = scmp.ne.s32.totalorder %s198, %s199
      %p208 = scmp.eq.s32.totalorder %s31, 0
      %p209 = por %p207, %p208
      %p210 = scmp.ne.s32.totalorder %s198, %s199
      %p211 = scmp.eq.s32.totalorder %s32, 1
      %p212 = por %p210, %p211
      %p214 = scmp.ne.s32.totalorder %s199, %s213
      %p215 = scmp.eq.s32.totalorder %s32, 0
      %p216 = por %p214, %p215
      %s218 = sadd.s32 %s217, 1
      %p221 = scmp.eq.s32.totalorder %s26, 1
      %p222 = scmp.ne.s32.totalorder %s217, %s219
      %p223 = scmp.eq.s32.totalorder %s26, 0
      %p224 = por %p222, %p223
      %p225 = scmp.ne.s32.totalorder %s217, %s219
      %p226 = scmp.eq.s32.totalorder %s31, 1
      %p227 = por %p225, %p226
      %p228 = scmp.ne.s32.totalorder %s219, %s220
      %p229 = scmp.eq.s32.totalorder %s31, 0
      %p230 = por %p228, %p229
      %p231 = scmp.ne.s32.totalorder %s219, %s220
      %p232 = scmp.eq.s32.totalorder %s32, 1
      %p233 = por %p231, %p232
      %p235 = scmp.ne.s32.totalorder %s220, %s234
      %p236 = scmp.eq.s32.totalorder %s32, 0
      %p237 = por %p235, %p236
      %s239 = sadd.s32 %s238, 1
      %p242 = scmp.eq.s32.totalorder %s26, 1
      %p243 = scmp.ne.s32.totalorder %s238, %s240
      %p244 = scmp.eq.s32.totalorder %s26, 0
      %p245 = por %p243, %p244
      %p246 = scmp.ne.s32.totalorder %s238, %s240
      %p247 = scmp.eq.s32.totalorder %s31, 1
      %p248 = por %p246, %p247
      %p249 = scmp.ne.s32.totalorder %s240, %s241
      %p250 = scmp.eq.s32.totalorder %s31, 0
      %p251 = por %p249, %p250
      %p252 = scmp.ne.s32.totalorder %s240, %s241
      %p253 = scmp.eq.s32.totalorder %s32, 1
      %p254 = por %p252, %p253
      %p256 = scmp.ne.s32.totalorder %s241, %s255
      %p257 = scmp.eq.s32.totalorder %s32, 0
      %p258 = por %p256, %p257
      %s260 = sadd.s32 %s259, 1
      %p263 = scmp.eq.s32.totalorder %s26, 1
      %p264 = scmp.ne.s32.totalorder %s259, %s261
      %p265 = scmp.eq.s32.totalorder %s26, 0
      %p266 = por %p264, %p265
      %p267 = scmp.ne.s32.totalorder %s259, %s261
      %p268 = scmp.eq.s32.totalorder %s31, 1
      %p269 = por %p267, %p268
      %p270 = scmp.ne.s32.totalorder %s261, %s262
      %p271 = scmp.eq.s32.totalorder %s31, 0
      %p272 = por %p270, %p271
      %p273 = scmp.ne.s32.totalorder %s261, %s262
      %p274 = scmp.eq.s32.totalorder %s32, 1
      %p275 = por %p273, %p274
      %p277 = scmp.ne.s32.totalorder %s262, %s276
      %p278 = scmp.eq.s32.totalorder %s32, 0
      %p279 = por %p277, %p278
      %s281 = sadd.s32 %s280, 1
      %p284 = scmp.eq.s32.totalorder %s26, 1
      %p285 = scmp.ne.s32.totalorder %s280, %s282
      %p286 = scmp.eq.s32.totalorder %s26, 0
      %p287 = por %p285, %p286
      %p288 = scmp.ne.s32.totalorder %s280, %s282
      %p289 = scmp.eq.s32.totalorder %s31, 1
      %p290 = por %p288, %p289
      %p291 = scmp.ne.s32.totalorder %s282, %s283
      %p292 = scmp.eq.s32.totalorder %s31, 0
      %p293 = por %p291, %p292
      %p294 = scmp.ne.s32.totalorder %s282, %s283
      %p295 = scmp.eq.s32.totalorder %s32, 1
      %p296 = por %p294, %p295
      %p298 = scmp.ne.s32.totalorder %s283, %s297
      %p299 = scmp.eq.s32.totalorder %s32, 0
      %p300 = por %p298, %p299
      %s302 = sadd.s32 %s301, 1
      %p305 = scmp.eq.s32.totalorder %s26, 1
      %p306 = scmp.ne.s32.totalorder %s301, %s303
      %p307 = scmp.eq.s32.totalorder %s26, 0
      %p308 = por %p306, %p307
      %p309 = scmp.ne.s32.totalorder %s301, %s303
      %p310 = scmp.eq.s32.totalorder %s31, 1
      %p311 = por %p309, %p310
      %p312 = scmp.ne.s32.totalorder %s303, %s304
      %p313 = scmp.eq.s32.totalorder %s31, 0
      %p314 = por %p312, %p313
      %p315 = scmp.ne.s32.totalorder %s303, %s304
      %p316 = scmp.eq.s32.totalorder %s32, 1
      %p317 = por %p315, %p316
      %p319 = scmp.ne.s32.totalorder %s304, %s318
      %p320 = scmp.eq.s32.totalorder %s32, 0
      %p321 = por %p319, %p320
      %s323 = sadd.s32 %s322, 1
      %p326 = scmp.eq.s32.totalorder %s26, 1
      %p327 = scmp.ne.s32.totalorder %s322, %s324
      %p328 = scmp.eq.s32.totalorder %s26, 0
      %p329 = por %p327, %p328
      %p330 = scmp.ne.s32.totalorder %s322, %s324
      %p331 = scmp.eq.s32.totalorder %s31, 1
      %p332 = por %p330, %p331
      %p333 = scmp.ne.s32.totalorder %s324, %s325
      %p334 = scmp.eq.s32.totalorder %s31, 0
      %p335 = por %p333, %p334
      %p336 = scmp.ne.s32.totalorder %s324, %s325
      %p337 = scmp.eq.s32.totalorder %s32, 1
      %p338 = por %p336, %p337
      %p340 = scmp.ne.s32.totalorder %s325, %s339
      %p341 = scmp.eq.s32.totalorder %s32, 0
      %p342 = por %p340, %p341
      %s344 = sadd.s32 %s343, 1
      %p347 = scmp.eq.s32.totalorder %s26, 1
      %p348 = scmp.ne.s32.totalorder %s343, %s345
      %p349 = scmp.eq.s32.totalorder %s26, 0
      %p350 = por %p348, %p349
      %p351 = scmp.ne.s32.totalorder %s343, %s345
      %p352 = scmp.eq.s32.totalorder %s31, 1
      %p353 = por %p351, %p352
      %p354 = scmp.ne.s32.totalorder %s345, %s346
      %p355 = scmp.eq.s32.totalorder %s31, 0
      %p356 = por %p354, %p355
      %p357 = scmp.ne.s32.totalorder %s345, %s346
      %p358 = scmp.eq.s32.totalorder %s32, 1
      %p359 = por %p357, %p358
      %p361 = scmp.ne.s32.totalorder %s346, %s360
      %p362 = scmp.eq.s32.totalorder %s32, 0
      %p363 = por %p361, %p362
      %s364 = ssub.s32 %s26, %s33
      %p365 = scmp.eq.s32.totalorder %s364, 0
      %s367 = sadd.s32 %s366, 1
      %s368 = scalar_select %p365, %s366, %s367
      %p371 = pneg %p365
      %p372 = scmp.eq.s32.totalorder %s26, 1
      %p373 = por %p371, %p372
      %p374 = scmp.ne.s32.totalorder %s366, %s369
      %p375 = scmp.eq.s32.totalorder %s26, 0
      %p376 = por %p374, %p375
      %p377 = scmp.ne.s32.totalorder %s366, %s369
      %p378 = scmp.eq.s32.totalorder %s31, 1
      %p379 = por %p377, %p378
      %p380 = scmp.ne.s32.totalorder %s369, %s370
      %p381 = scmp.eq.s32.totalorder %s31, 0
      %p382 = por %p380, %p381
      %p383 = scmp.ne.s32.totalorder %s369, %s370
      %p384 = scmp.eq.s32.totalorder %s32, 1
      %p385 = por %p383, %p384
      %p387 = scmp.ne.s32.totalorder %s370, %s386
      %p388 = scmp.eq.s32.totalorder %s32, 0
      %p389 = por %p387, %p388
      %p390 = scmp.le.s32.totalorder 1, %s26
      %p391 = scmp.lt.s32.totalorder %s26, 3
      %p392 = pnand %p390, %p391
      %p393 = pneg %p392
      // Predicated region
      $region9: #{tpu_custom_call.1} parent=5 // pred_check
        _
      $region10: #{tpu_custom_call.1} parent=5 // pred_check_branch
        %395 = sbr.rel (%p392) target = $region12
      $region11: #{tpu_custom_call.1} parent=5 // pred_region
        %s396 = ssub.s32 %s26, 1
        // Predicated region
        $region13: #{tpu_custom_call.1} parent=11 // pred_check
          %p397 = pneg %p73
        $region14: #{tpu_custom_call.1} parent=11 // pred_check_branch
          %399 = sbr.rel (%p397) target = $region16
        $region15: #{tpu_custom_call.1} parent=11 // pred_region
          _
        $region16: #{tpu_custom_call.1} parent=11 // pred_fallthru
          _
        // Predicated region
        $region17: #{tpu_custom_call.1} parent=11 // pred_check
          %p400 = pneg %p94
        $region18: #{tpu_custom_call.1} parent=11 // pred_check_branch
          %402 = sbr.rel (%p400) target = $region20
        $region19: #{tpu_custom_call.1} parent=11 // pred_region
          _
        $region20: #{tpu_custom_call.1} parent=11 // pred_fallthru
          _
        // Predicated region
        $region21: #{tpu_custom_call.1} parent=11 // pred_check
          %p403 = pneg %p167
        $region22: #{tpu_custom_call.1} parent=11 // pred_check_branch
          %405 = sbr.rel (%p403) target = $region24
        $region23: #{tpu_custom_call.1} parent=11 // pred_region
          _
        $region24: #{tpu_custom_call.1} parent=11 // pred_fallthru
          _
        // Predicated region
        $region25: #{tpu_custom_call.1} parent=11 // pred_check
          %p406 = pneg %p188
        $region26: #{tpu_custom_call.1} parent=11 // pred_check_branch
          %408 = sbr.rel (%p406) target = $region28
        $region27: #{tpu_custom_call.1} parent=11 // pred_region
          _
        $region28: #{tpu_custom_call.1} parent=11 // pred_fallthru
          _
        // Predicated region
        $region29: #{tpu_custom_call.1} parent=11 // pred_check
          %p409 = pneg %p209
        $region30: #{tpu_custom_call.1} parent=11 // pred_check_branch
          %411 = sbr.rel (%p409) target = $region32
        $region31: #{tpu_custom_call.1} parent=11 // pred_region
          _
        $region32: #{tpu_custom_call.1} parent=11 // pred_fallthru
          _
        // Predicated region
        $region33: #{tpu_custom_call.1} parent=11 // pred_check
          %p412 = pneg %p230
        $region34: #{tpu_custom_call.1} parent=11 // pred_check_branch
          %414 = sbr.rel (%p412) target = $region36
        $region35: #{tpu_custom_call.1} parent=11 // pred_region
          _
        $region36: #{tpu_custom_call.1} parent=11 // pred_fallthru
          _
        // Predicated region
        $region37: #{tpu_custom_call.1} parent=11 // pred_check
          %p415 = pneg %p251
        $region38: #{tpu_custom_call.1} parent=11 // pred_check_branch
          %417 = sbr.rel (%p415) target = $region40
        $region39: #{tpu_custom_call.1} parent=11 // pred_region
          %s419 = ssub.s32 1024, 1024
          %420 = vsyncadd [#allocation4], %s419
          %s421 = sshll.u32 [#allocation3], 4
          %s422 = int_to_ptr.vmem [resolvable:$true] %s421
          %427 = dma.hbm_to_vmem [thread:$0]  %s9, 1024, %s422, [#allocation4], 64, 64, 4
        $region40: #{tpu_custom_call.1} parent=11 // pred_fallthru
          _
        // Predicated region
        $region41: #{tpu_custom_call.1} parent=11 // pred_check
          %p428 = pneg %p272
        $region42: #{tpu_custom_call.1} parent=11 // pred_check_branch
          %430 = sbr.rel (%p428) target = $region44
        $region43: #{tpu_custom_call.1} parent=11 // pred_region
          _
        $region44: #{tpu_custom_call.1} parent=11 // pred_fallthru
          _
        // Predicated region
        $region45: #{tpu_custom_call.1} parent=11 // pred_check
          %p431 = pneg %p293
        $region46: #{tpu_custom_call.1} parent=11 // pred_check_branch
          %433 = sbr.rel (%p431) target = $region48
        $region47: #{tpu_custom_call.1} parent=11 // pred_region
          %s435 = ssub.s32 1024, 1024
          %436 = vsyncadd [#allocation7], %s435
          %s437 = sshll.u32 [#allocation6], 4
          %s438 = int_to_ptr.vmem [resolvable:$true] %s437
          %443 = dma.hbm_to_vmem [thread:$0]  %s11, 1024, %s438, [#allocation7], 64, 64, 4
        $region48: #{tpu_custom_call.1} parent=11 // pred_fallthru
          _
        // Predicated region
        $region49: #{tpu_custom_call.1} parent=11 // pred_check
          %p444 = pneg %p314
        $region50: #{tpu_custom_call.1} parent=11 // pred_check_branch
          %446 = sbr.rel (%p444) target = $region52
        $region51: #{tpu_custom_call.1} parent=11 // pred_region
          _
        $region52: #{tpu_custom_call.1} parent=11 // pred_fallthru
          _
        // Predicated region
        $region53: #{tpu_custom_call.1} parent=11 // pred_check
          %p447 = pneg %p335
        $region54: #{tpu_custom_call.1} parent=11 // pred_check_branch
          %449 = sbr.rel (%p447) target = $region56
        $region55: #{tpu_custom_call.1} parent=11 // pred_region
          %s451 = ssub.s32 1024, 1024
          %452 = vsyncadd [#allocation7], %s451
          %s453 = sshll.u32 [#allocation8], 4
          %s454 = int_to_ptr.vmem [resolvable:$true] %s453
          %459 = dma.hbm_to_vmem [thread:$0]  %s13, 1024, %s454, [#allocation7], 64, 64, 4
        $region56: #{tpu_custom_call.1} parent=11 // pred_fallthru
          _
        // Predicated region
        $region57: #{tpu_custom_call.1} parent=11 // pred_check
          %p460 = pneg %p356
        $region58: #{tpu_custom_call.1} parent=11 // pred_check_branch
          %462 = sbr.rel (%p460) target = $region60
        $region59: #{tpu_custom_call.1} parent=11 // pred_region
          _
        $region60: #{tpu_custom_call.1} parent=11 // pred_fallthru
          _
      $region12: #{tpu_custom_call.1} parent=5 // pred_fallthru
        _
      %p463 = scmp.lt.s32.totalorder %s26, 2
      // Predicated region
      $region61: #{tpu_custom_call.1} parent=5 // pred_check
        %p464 = pneg %p463
      $region62: #{tpu_custom_call.1} parent=5 // pred_check_branch
        %466 = sbr.rel (%p464) target = $region64
      $region63: #{tpu_custom_call.1} parent=5 // pred_region
        // Predicated region
        $region65: #{tpu_custom_call.1} parent=63 // pred_check
          %p467 = pneg %p46
        $region66: #{tpu_custom_call.1} parent=63 // pred_check_branch
          %469 = sbr.rel (%p467) target = $region68
        $region67: #{tpu_custom_call.1} parent=63 // pred_region
          %p470 = scmp.lt.s32.totalorder %s26, 1
          %s471 = scalar_select %p470, %s26, 1
          %s472 = smul.addr %s471, 2
          %s473 = scalar_lea.vmem %s0, %s472
        $region68: #{tpu_custom_call.1} parent=63 // pred_fallthru
          _
        // Predicated region
        $region69: #{tpu_custom_call.1} parent=63 // pred_check
          %p474 = pneg %p114
        $region70: #{tpu_custom_call.1} parent=63 // pred_check_branch
          %476 = sbr.rel (%p474) target = $region72
        $region71: #{tpu_custom_call.1} parent=63 // pred_region
          %p477 = scmp.lt.s32.totalorder %s26, 1
          %s478 = scalar_select %p477, %s26, 1
          %s479 = scalar_lea.vmem %s3, %s478
        $region72: #{tpu_custom_call.1} parent=63 // pred_fallthru
          _
        // Predicated region
        $region73: #{tpu_custom_call.1} parent=63 // pred_check
          %p480 = pneg %p140
        $region74: #{tpu_custom_call.1} parent=63 // pred_check_branch
          %482 = sbr.rel (%p480) target = $region76
        $region75: #{tpu_custom_call.1} parent=63 // pred_region
          %p483 = scmp.lt.s32.totalorder %s26, 1
          %s484 = scalar_select %p483, %s26, 1
          %s485 = scalar_lea.vmem %s4, %s484
        $region76: #{tpu_custom_call.1} parent=63 // pred_fallthru
          _
      $region64: #{tpu_custom_call.1} parent=5 // pred_fallthru
        _
      %p486 = scmp.le.s32.totalorder 1, %s26
      %p487 = scmp.lt.s32.totalorder %s26, 3
      %p488 = pnand %p486, %p487
      %p489 = pneg %p488
      // Predicated region
      $region77: #{tpu_custom_call.1} parent=5 // pred_check
        _
      $region78: #{tpu_custom_call.1} parent=5 // pred_check_branch
        %491 = sbr.rel (%p488) target = $region80
      $region79: #{tpu_custom_call.1} parent=5 // pred_region
        %s492 = ssub.s32 %s26, 1
        // Predicated region
        $region81: #{tpu_custom_call.1} parent=79 // pred_check
          %p493 = pneg %p251
        $region82: #{tpu_custom_call.1} parent=79 // pred_check_branch
          %495 = sbr.rel (%p493) target = $region84
        $region83: #{tpu_custom_call.1} parent=79 // pred_region
          %496 = dma.done [#allocation4], 1024
        $region84: #{tpu_custom_call.1} parent=79 // pred_fallthru
          _
        // Predicated region
        $region85: #{tpu_custom_call.1} parent=79 // pred_check
          %p497 = pneg %p293
        $region86: #{tpu_custom_call.1} parent=79 // pred_check_branch
          %499 = sbr.rel (%p497) target = $region88
        $region87: #{tpu_custom_call.1} parent=79 // pred_region
          %500 = dma.done [#allocation7], 1024
        $region88: #{tpu_custom_call.1} parent=79 // pred_fallthru
          _
        // Predicated region
        $region89: #{tpu_custom_call.1} parent=79 // pred_check
          %p501 = pneg %p335
        $region90: #{tpu_custom_call.1} parent=79 // pred_check_branch
          %503 = sbr.rel (%p501) target = $region92
        $region91: #{tpu_custom_call.1} parent=79 // pred_region
          %504 = dma.done [#allocation7], 1024
        $region92: #{tpu_custom_call.1} parent=79 // pred_fallthru
          _
        %p505 = scmp.lt.s32.totalorder %s31, 1
        %s506 = scalar_select %p505, %s31, 1
        %s507 = smul.addr %s506, 2
        %s508 = scalar_lea.vmem %s0, %s507
        %p509 = pneg %p52
        %p510 = pneg %p49
        %p511 = pneg %p73
        %p512 = pneg %p70
        %p513 = pneg %p94
        %p514 = pneg %p91
        %p515 = scmp.lt.s32.totalorder %s31, 1
        %s516 = scalar_select %p515, %s31, 1
        %s517 = scalar_lea.vmem %s3, %s516
        %p518 = pneg %p120
        %p519 = pneg %p117
        %p520 = scmp.lt.s32.totalorder %s31, 1
        %s521 = scalar_select %p520, %s31, 1
        %s522 = scalar_lea.vmem %s4, %s521
        %p523 = pneg %p146
        %p524 = pneg %p143
        %p525 = pneg %p167
        %p526 = pneg %p164
        %p527 = pneg %p188
        %p528 = pneg %p185
        %p529 = pneg %p209
        %p530 = pneg %p206
        %p531 = pneg %p230
        %p532 = pneg %p227
        %p533 = pneg %p251
        %p534 = pneg %p248
        %p535 = pneg %p272
        %p536 = pneg %p269
        %p537 = pneg %p293
        %p538 = pneg %p290
        %p539 = pneg %p314
        %p540 = pneg %p311
        %p541 = pneg %p335
        %p542 = pneg %p332
        %p543 = pneg %p356
        %p544 = pneg %p353
        %p545 = pneg %p382
        %p546 = pneg %p379
        %s547 = sand.u32 %s369, 1
        %s548 = scalar_lea.sflag [#allocation5], %s547
        %s549 = sand.u32 %s369, 1
        %s550 = scalar_lea.vmem [#allocation9], %s549
        %p551 = scmp.lt.s32.totalorder %s31, 1
        %s552 = scalar_select %p551, %s31, 1
        %s553 = smul.addr %s552, 2
        %s554 = scalar_lea.vmem %s0, %s553
        %p555 = scmp.lt.s32.totalorder %s31, 1
        %s556 = scalar_select %p555, %s31, 1
        %s557 = scalar_lea.vmem %s3, %s556
        %p558 = scmp.lt.s32.totalorder %s31, 1
        %s559 = scalar_select %p558, %s31, 1
        %s560 = scalar_lea.vmem %s4, %s559
        %v562 = vld [vmem:[%s554] sm:$0x3]
        %v563 = vld [vmem:[%s5] sm:$0xff]
        %v564 = vld [vmem:[%s5 + $0x8] sm:$0xff]
        %v565 = vld [vmem:[%s5 + $0x10] sm:$0xff]
        %v566 = vld [vmem:[%s5 + $0x18] sm:$0xff]
        %v567 = vld [vmem:[%s5 + $0x20] sm:$0xff]
        %v568 = vld [vmem:[%s5 + $0x28] sm:$0xff]
        %v569 = vld [vmem:[%s5 + $0x30] sm:$0xff]
        %v570 = vld [vmem:[%s5 + $0x38] sm:$0xff]
        %v571 = vld [vmem:[%s5 + $0x40] sm:$0xff]
        %v572 = vld [vmem:[%s5 + $0x48] sm:$0xff]
        %v573 = vld [vmem:[%s5 + $0x50] sm:$0xff]
        %v574 = vld [vmem:[%s5 + $0x58] sm:$0xff]
        %v575 = vld [vmem:[%s5 + $0x60] sm:$0xff]
        %v576 = vld [vmem:[%s5 + $0x68] sm:$0xff]
        %v577 = vld [vmem:[%s5 + $0x70] sm:$0xff]
        %v578 = vld [vmem:[%s5 + $0x78] sm:$0xff]
        %v579 = vld [vmem:[%s6] sm:$0x3]
        %v581 = vlaneseq
        %v582 = vshrl.u32 %v581, 7
        %v583 = vsub.s32 0, %v582
        %v584 = vrot.slane %v579, %v583
        %v585 = vlaneseq
        %v586 = vshrl.u32 %v585, 7
        %v587 = vsub.s32 1, %v586
        %v588 = vrot.slane %v579, %v587
        %v607 = vunpack.c.l.b16 %v563
        %v608 = vunpack.c.h.b16 %v563
        %v609 = vunpack.c.l.b16 %v564
        %v610 = vunpack.c.h.b16 %v564
        %v611 = vunpack.c.l.b16 %v565
        %v612 = vunpack.c.h.b16 %v565
        %v613 = vunpack.c.l.b16 %v566
        %v614 = vunpack.c.h.b16 %v566
        %v615 = vunpack.c.l.b16 %v567
        %v616 = vunpack.c.h.b16 %v567
        %v617 = vunpack.c.l.b16 %v568
        %v618 = vunpack.c.h.b16 %v568
        %v619 = vunpack.c.l.b16 %v569
        %v620 = vunpack.c.h.b16 %v569
        %v621 = vunpack.c.l.b16 %v570
        %v622 = vunpack.c.h.b16 %v570
        %v623 = vunpack.c.l.b16 %v571
        %v624 = vunpack.c.h.b16 %v571
        %v625 = vunpack.c.l.b16 %v572
        %v626 = vunpack.c.h.b16 %v572
        %v627 = vunpack.c.l.b16 %v573
        %v628 = vunpack.c.h.b16 %v573
        %v629 = vunpack.c.l.b16 %v574
        %v630 = vunpack.c.h.b16 %v574
        %v631 = vunpack.c.l.b16 %v575
        %v632 = vunpack.c.h.b16 %v575
        %v633 = vunpack.c.l.b16 %v576
        %v634 = vunpack.c.h.b16 %v576
        %v635 = vunpack.c.l.b16 %v577
        %v636 = vunpack.c.h.b16 %v577
        %v637 = vunpack.c.l.b16 %v578
        %v638 = vunpack.c.h.b16 %v578
        %v639 = vpack.c.b16 %v609, %v607
        %v640 = vpack.c.b16 %v610, %v608
        %v641 = vpack.c.b16 %v613, %v611
        %v642 = vpack.c.b16 %v614, %v612
        %v643 = vpack.c.b16 %v617, %v615
        %v644 = vpack.c.b16 %v618, %v616
        %v645 = vpack.c.b16 %v621, %v619
        %v646 = vpack.c.b16 %v622, %v620
        %v647 = vpack.c.b16 %v625, %v623
        %v648 = vpack.c.b16 %v626, %v624
        %v649 = vpack.c.b16 %v629, %v627
        %v650 = vpack.c.b16 %v630, %v628
        %v651 = vpack.c.b16 %v633, %v631
        %v652 = vpack.c.b16 %v634, %v632
        %v653 = vpack.c.b16 %v637, %v635
        %v654 = vpack.c.b16 %v638, %v636
        %671 = vmatprep.subr.bf16.mxu0 %v654
        %672 = vmatpush1.bf16.msra.mxu0 %v653
        %673 = vmatprep.subr.bf16.mxu0 %v652
        %674 = vmatpush1.bf16.msra.mxu0 %v651
        %675 = vmatprep.subr.bf16.mxu0 %v650
        %676 = vmatpush1.bf16.msra.mxu0 %v649
        %677 = vmatprep.subr.bf16.mxu0 %v648
        %678 = vmatpush1.bf16.msra.mxu0 %v647
        %679 = vmatprep.subr.bf16.mxu0 %v646
        %680 = vmatpush1.bf16.msra.mxu0 %v645
        %681 = vmatprep.subr.bf16.mxu0 %v644
        %682 = vmatpush1.bf16.msra.mxu0 %v643
        %683 = vmatprep.subr.bf16.mxu0 %v642
        %684 = vmatpush1.bf16.msra.mxu0 %v641
        %685 = vmatprep.subr.bf16.mxu0 %v640
        %686 = vmatpush1.bf16.msra.mxu0 %v639
        %687 = vmatprep.subr.bf16.mxu0 0
        %688 = vmatpush2.bf16.msra.mxu0 0
        %689 = vmatprep.subr.bf16.mxu0 0
        %690 = vmatpush2.bf16.msra.mxu0 0
        %691 = vmatprep.subr.bf16.mxu0 0
        %692 = vmatpush2.bf16.msra.mxu0 0
        %693 = vmatprep.subr.bf16.mxu0 0
        %694 = vmatpush2.bf16.msra.mxu0 0
        %695 = vmatprep.subr.bf16.mxu0 0
        %696 = vmatpush2.bf16.msra.mxu0 0
        %697 = vmatprep.subr.bf16.mxu0 0
        %698 = vmatpush2.bf16.msra.mxu0 0
        %699 = vmatprep.subr.bf16.mxu0 0
        %700 = vmatpush2.bf16.msra.mxu0 0
        %701 = vmatprep.subr.bf16.mxu0 0
        %702 = vmatpush2.bf16.msra.mxu0 0
        %703 = vmatprep.mubr.bf16.mxu0 0
        %704 = vmatmul.mubr.bf16.gmra.mxu0 %v562
        %v705 = vpop.f32.mrf.mxu0
        %v706 = vadd.f32 %v584, %v705
        %v707 = vpop.f32.mrf.mxu0
        %v708 = vadd.f32 %v588, %v707
        %v709 = vpop.f32.mrf.mxu0
        %v710 = vpop.f32.mrf.mxu0
        %711 = vdwg.mxu0
        %v712 = vmax.f32 %v706, 0.0
        %v713 = vmax.f32 %v708, 0.0
        %v714 = vpack.c.bf16 %v712, %v712
        %v715 = vpack.c.bf16 %v713, %v713
        %v716 = vld [vmem:[%s7] sm:$0xf]
        %v717 = vld [vmem:[%s7 + $0x4] sm:$0xf]
        %v718 = vld [vmem:[%s7 + $0x8] sm:$0xf]
        %v719 = vld [vmem:[%s7 + $0xc] sm:$0xf]
        %v720 = vld [vmem:[%s7 + $0x10] sm:$0xf]
        %v721 = vld [vmem:[%s7 + $0x14] sm:$0xf]
        %v722 = vld [vmem:[%s7 + $0x18] sm:$0xf]
        %v723 = vld [vmem:[%s7 + $0x1c] sm:$0xf]
        %v724 = vld [vmem:[%s7 + $0x20] sm:$0xf]
        %v725 = vld [vmem:[%s7 + $0x24] sm:$0xf]
        %v726 = vld [vmem:[%s7 + $0x28] sm:$0xf]
        %v727 = vld [vmem:[%s7 + $0x2c] sm:$0xf]
        %v728 = vld [vmem:[%s7 + $0x30] sm:$0xf]
        %v729 = vld [vmem:[%s7 + $0x34] sm:$0xf]
        %v730 = vld [vmem:[%s7 + $0x38] sm:$0xf]
        %v731 = vld [vmem:[%s7 + $0x3c] sm:$0xf]
        %v732 = vld [vmem:[%s7 + $0x40] sm:$0xf]
        %v733 = vld [vmem:[%s7 + $0x44] sm:$0xf]
        %v734 = vld [vmem:[%s7 + $0x48] sm:$0xf]
        %v735 = vld [vmem:[%s7 + $0x4c] sm:$0xf]
        %v736 = vld [vmem:[%s7 + $0x50] sm:$0xf]
        %v737 = vld [vmem:[%s7 + $0x54] sm:$0xf]
        %v738 = vld [vmem:[%s7 + $0x58] sm:$0xf]
        %v739 = vld [vmem:[%s7 + $0x5c] sm:$0xf]
        %v740 = vld [vmem:[%s7 + $0x60] sm:$0xf]
        %v741 = vld [vmem:[%s7 + $0x64] sm:$0xf]
        %v742 = vld [vmem:[%s7 + $0x68] sm:$0xf]
        %v743 = vld [vmem:[%s7 + $0x6c] sm:$0xf]
        %v744 = vld [vmem:[%s7 + $0x70] sm:$0xf]
        %v745 = vld [vmem:[%s7 + $0x74] sm:$0xf]
        %v746 = vld [vmem:[%s7 + $0x78] sm:$0xf]
        %v747 = vld [vmem:[%s7 + $0x7c] sm:$0xf]
        %v748 = vld [vmem:[%s8] sm:$0x1]
        %v750 = vlaneseq
        %v751 = vshrl.u32 %v750, 7
        %v752 = vsub.s32 0, %v751
        %v753 = vrot.slane %v748, %v752
        %v787 = vunpack.c.l.b16 %v716
        %v788 = vunpack.c.l.b16 %v717
        %v789 = vunpack.c.l.b16 %v718
        %v790 = vunpack.c.l.b16 %v719
        %v791 = vunpack.c.l.b16 %v720
        %v792 = vunpack.c.l.b16 %v721
        %v793 = vunpack.c.l.b16 %v722
        %v794 = vunpack.c.l.b16 %v723
        %v795 = vunpack.c.l.b16 %v724
        %v796 = vunpack.c.l.b16 %v725
        %v797 = vunpack.c.l.b16 %v726
        %v798 = vunpack.c.l.b16 %v727
        %v799 = vunpack.c.l.b16 %v728
        %v800 = vunpack.c.l.b16 %v729
        %v801 = vunpack.c.l.b16 %v730
        %v802 = vunpack.c.l.b16 %v731
        %v803 = vunpack.c.l.b16 %v732
        %v804 = vunpack.c.l.b16 %v733
        %v805 = vunpack.c.l.b16 %v734
        %v806 = vunpack.c.l.b16 %v735
        %v807 = vunpack.c.l.b16 %v736
        %v808 = vunpack.c.l.b16 %v737
        %v809 = vunpack.c.l.b16 %v738
        %v810 = vunpack.c.l.b16 %v739
        %v811 = vunpack.c.l.b16 %v740
        %v812 = vunpack.c.l.b16 %v741
        %v813 = vunpack.c.l.b16 %v742
        %v814 = vunpack.c.l.b16 %v743
        %v815 = vunpack.c.l.b16 %v744
        %v816 = vunpack.c.l.b16 %v745
        %v817 = vunpack.c.l.b16 %v746
        %v818 = vunpack.c.l.b16 %v747
        %v819 = vpack.c.b16 %v788, %v787
        %v820 = vpack.c.b16 %v790, %v789
        %v821 = vpack.c.b16 %v792, %v791
        %v822 = vpack.c.b16 %v794, %v793
        %v823 = vpack.c.b16 %v796, %v795
        %v824 = vpack.c.b16 %v798, %v797
        %v825 = vpack.c.b16 %v800, %v799
        %v826 = vpack.c.b16 %v802, %v801
        %v827 = vpack.c.b16 %v804, %v803
        %v828 = vpack.c.b16 %v806, %v805
        %v829 = vpack.c.b16 %v808, %v807
        %v830 = vpack.c.b16 %v810, %v809
        %v831 = vpack.c.b16 %v812, %v811
        %v832 = vpack.c.b16 %v814, %v813
        %v833 = vpack.c.b16 %v816, %v815
        %v834 = vpack.c.b16 %v818, %v817
        %851 = vmatprep.subr.bf16.mxu0 0
        %852 = vmatpush1.bf16.msra.mxu0 %v826
        %853 = vmatprep.subr.bf16.mxu0 0
        %854 = vmatpush1.bf16.msra.mxu0 %v825
        %855 = vmatprep.subr.bf16.mxu0 0
        %856 = vmatpush1.bf16.msra.mxu0 %v824
        %857 = vmatprep.subr.bf16.mxu0 0
        %858 = vmatpush1.bf16.msra.mxu0 %v823
        %859 = vmatprep.subr.bf16.mxu0 0
        %860 = vmatpush1.bf16.msra.mxu0 %v822
        %861 = vmatprep.subr.bf16.mxu0 0
        %862 = vmatpush1.bf16.msra.mxu0 %v821
        %863 = vmatprep.subr.bf16.mxu0 0
        %864 = vmatpush1.bf16.msra.mxu0 %v820
        %865 = vmatprep.subr.bf16.mxu0 0
        %866 = vmatpush1.bf16.msra.mxu0 %v819
        %867 = vmatprep.subr.bf16.mxu0 0
        %868 = vmatpush2.bf16.msra.mxu0 %v834
        %869 = vmatprep.subr.bf16.mxu0 0
        %870 = vmatpush2.bf16.msra.mxu0 %v833
        %871 = vmatprep.subr.bf16.mxu0 0
        %872 = vmatpush2.bf16.msra.mxu0 %v832
        %873 = vmatprep.subr.bf16.mxu0 0
        %874 = vmatpush2.bf16.msra.mxu0 %v831
        %875 = vmatprep.subr.bf16.mxu0 0
        %876 = vmatpush2.bf16.msra.mxu0 %v830
        %877 = vmatprep.subr.bf16.mxu0 0
        %878 = vmatpush2.bf16.msra.mxu0 %v829
        %879 = vmatprep.subr.bf16.mxu0 0
        %880 = vmatpush2.bf16.msra.mxu0 %v828
        %881 = vmatprep.subr.bf16.mxu0 0
        %882 = vmatpush2.bf16.msra.mxu0 %v827
        %883 = vmatprep.mubr.bf16.mxu0 %v715
        %884 = vmatmul.mubr.bf16.gmra.mxu0 %v714
        %v885 = vpop.f32.mrf.mxu0
        %v886 = vadd.f32 %v753, %v885
        %v887 = vpop.f32.mrf.mxu0
        %v888 = vpop.f32.mrf.mxu0
        %v889 = vpop.f32.mrf.mxu0
        %890 = vdwg.mxu0
        %v891 = vpack.c.bf16 %v886, %v886
        %v892 = vld [vmem:[#allocation3] sm:$0xf]
        %v893 = vld [vmem:[#allocation3 + $0x4] sm:$0xf]
        %v894 = vld [vmem:[#allocation3 + $0x8] sm:$0xf]
        %v895 = vld [vmem:[#allocation3 + $0xc] sm:$0xf]
        %v896 = vld [vmem:[#allocation3 + $0x10] sm:$0xf]
        %v897 = vld [vmem:[#allocation3 + $0x14] sm:$0xf]
        %v898 = vld [vmem:[#allocation3 + $0x18] sm:$0xf]
        %v899 = vld [vmem:[#allocation3 + $0x1c] sm:$0xf]
        %v900 = vld [vmem:[#allocation3 + $0x20] sm:$0xf]
        %v901 = vld [vmem:[#allocation3 + $0x24] sm:$0xf]
        %v902 = vld [vmem:[#allocation3 + $0x28] sm:$0xf]
        %v903 = vld [vmem:[#allocation3 + $0x2c] sm:$0xf]
        %v904 = vld [vmem:[#allocation3 + $0x30] sm:$0xf]
        %v905 = vld [vmem:[#allocation3 + $0x34] sm:$0xf]
        %v906 = vld [vmem:[#allocation3 + $0x38] sm:$0xf]
        %v907 = vld [vmem:[#allocation3 + $0x3c] sm:$0xf]
        %v908 = vld [vmem:[%s10] sm:$0x1]
        %v910 = vlaneseq
        %v911 = vshrl.u32 %v910, 7
        %v912 = vsub.s32 0, %v911
        %v913 = vrot.slane %v908, %v912
        %v931 = vunpack.c.l.b16 %v892
        %v932 = vunpack.c.l.b16 %v893
        %v933 = vunpack.c.l.b16 %v894
        %v934 = vunpack.c.l.b16 %v895
        %v935 = vunpack.c.l.b16 %v896
        %v936 = vunpack.c.l.b16 %v897
        %v937 = vunpack.c.l.b16 %v898
        %v938 = vunpack.c.l.b16 %v899
        %v939 = vunpack.c.l.b16 %v900
        %v940 = vunpack.c.l.b16 %v901
        %v941 = vunpack.c.l.b16 %v902
        %v942 = vunpack.c.l.b16 %v903
        %v943 = vunpack.c.l.b16 %v904
        %v944 = vunpack.c.l.b16 %v905
        %v945 = vunpack.c.l.b16 %v906
        %v946 = vunpack.c.l.b16 %v907
        %v947 = vpack.c.b16 %v932, %v931
        %v948 = vpack.c.b16 %v934, %v933
        %v949 = vpack.c.b16 %v936, %v935
        %v950 = vpack.c.b16 %v938, %v937
        %v951 = vpack.c.b16 %v940, %v939
        %v952 = vpack.c.b16 %v942, %v941
        %v953 = vpack.c.b16 %v944, %v943
        %v954 = vpack.c.b16 %v946, %v945
        %963 = vmatprep.subr.bf16.mxu0 0
        %964 = vmatpush1.bf16.msra.mxu0 %v954
        %965 = vmatprep.subr.bf16.mxu0 0
        %966 = vmatpush1.bf16.msra.mxu0 %v953
        %967 = vmatprep.subr.bf16.mxu0 0
        %968 = vmatpush1.bf16.msra.mxu0 %v952
        %969 = vmatprep.subr.bf16.mxu0 0
        %970 = vmatpush1.bf16.msra.mxu0 %v951
        %971 = vmatprep.subr.bf16.mxu0 0
        %972 = vmatpush1.bf16.msra.mxu0 %v950
        %973 = vmatprep.subr.bf16.mxu0 0
        %974 = vmatpush1.bf16.msra.mxu0 %v949
        %975 = vmatprep.subr.bf16.mxu0 0
        %976 = vmatpush1.bf16.msra.mxu0 %v948
        %977 = vmatprep.subr.bf16.mxu0 0
        %978 = vmatpush1.bf16.msra.mxu0 %v947
        %979 = vmatprep.subr.bf16.mxu0 0
        %980 = vmatpush2.bf16.msra.mxu0 0
        %981 = vmatprep.subr.bf16.mxu0 0
        %982 = vmatpush2.bf16.msra.mxu0 0
        %983 = vmatprep.subr.bf16.mxu0 0
        %984 = vmatpush2.bf16.msra.mxu0 0
        %985 = vmatprep.subr.bf16.mxu0 0
        %986 = vmatpush2.bf16.msra.mxu0 0
        %987 = vmatprep.subr.bf16.mxu0 0
        %988 = vmatpush2.bf16.msra.mxu0 0
        %989 = vmatprep.subr.bf16.mxu0 0
        %990 = vmatpush2.bf16.msra.mxu0 0
        %991 = vmatprep.subr.bf16.mxu0 0
        %992 = vmatpush2.bf16.msra.mxu0 0
        %993 = vmatprep.subr.bf16.mxu0 0
        %994 = vmatpush2.bf16.msra.mxu0 0
        %995 = vmatprep.mubr.bf16.mxu0 0
        %996 = vmatmul.mubr.bf16.gmra.mxu0 %v891
        %v997 = vpop.f32.mrf.mxu0
        %v998 = vadd.f32 %v913, %v997
        %v999 = vpop.f32.mrf.mxu0
        %v1000 = vpop.f32.mrf.mxu0
        %v1001 = vpop.f32.mrf.mxu0
        %1002 = vdwg.mxu0
        %v1003 = vpack.c.bf16 %v998, %v998
        %v1004 = vld [vmem:[%s1] sm:$0xf]
        %v1005 = vld [vmem:[%s1 + $0x4] sm:$0xf]
        %v1006 = vld [vmem:[%s1 + $0x8] sm:$0xf]
        %v1007 = vld [vmem:[%s1 + $0xc] sm:$0xf]
        %v1012 = vunpack.c.l.b16 %v1004
        %v1013 = vunpack.c.l.b16 %v1005
        %v1014 = vunpack.c.l.b16 %v1006
        %v1015 = vunpack.c.l.b16 %v1007
        %v1016 = vpack.c.b16 %v1013, %v1012
        %v1017 = vpack.c.b16 %v1015, %v1014
        %vm1020 = vcmask 261120
        %v1022 = vsel %vm1020, %v1003, 0
        %1024 = vmatprep.subr.bf16.mxu0 0
        %1025 = vmatpush1.bf16.msra.mxu0 0
        %1026 = vmatprep.subr.bf16.mxu0 0
        %1027 = vmatpush1.bf16.msra.mxu0 0
        %1028 = vmatprep.subr.bf16.mxu0 0
        %1029 = vmatpush1.bf16.msra.mxu0 0
        %1030 = vmatprep.subr.bf16.mxu0 0
        %1031 = vmatpush1.bf16.msra.mxu0 0
        %1032 = vmatprep.subr.bf16.mxu0 0
        %1033 = vmatpush1.bf16.msra.mxu0 0
        %1034 = vmatprep.subr.bf16.mxu0 0
        %1035 = vmatpush1.bf16.msra.mxu0 0
        %1036 = vmatprep.subr.bf16.mxu0 0
        %1037 = vmatpush1.bf16.msra.mxu0 %v1017
        %1038 = vmatprep.subr.bf16.mxu0 0
        %1039 = vmatpush1.bf16.msra.mxu0 %v1016
        %1040 = vmatprep.subr.bf16.mxu0 0
        %1041 = vmatpush2.bf16.msra.mxu0 0
        %1042 = vmatprep.subr.bf16.mxu0 0
        %1043 = vmatpush2.bf16.msra.mxu0 0
        %1044 = vmatprep.subr.bf16.mxu0 0
        %1045 = vmatpush2.bf16.msra.mxu0 0
        %1046 = vmatprep.subr.bf16.mxu0 0
        %1047 = vmatpush2.bf16.msra.mxu0 0
        %1048 = vmatprep.subr.bf16.mxu0 0
        %1049 = vmatpush2.bf16.msra.mxu0 0
        %1050 = vmatprep.subr.bf16.mxu0 0
        %1051 = vmatpush2.bf16.msra.mxu0 0
        %1052 = vmatprep.subr.bf16.mxu0 0
        %1053 = vmatpush2.bf16.msra.mxu0 0
        %1054 = vmatprep.subr.bf16.mxu0 0
        %1055 = vmatpush2.bf16.msra.mxu0 0
        %1056 = vmatprep.mubr.bf16.mxu0 0
        %1057 = vmatmul.mubr.bf16.gmra.mxu0 %v1022
        %v1058 = vpop.f32.mrf.mxu0
        %v1059 = vadd.f32 0.0, %v1058
        %v1060 = vpop.f32.mrf.mxu0
        %v1061 = vpop.f32.mrf.mxu0
        %v1062 = vpop.f32.mrf.mxu0
        %1063 = vdwg.mxu0
        %vm1064 = vcmask 1042432
        %v1065 = vsel %vm1064, %v1059, -inf
        %1066 = vmax.xlane.f32.xlu0 %v1065
        %v1067 = vpop.xlane.xlu0 %1066
        %v1068 = vsub.f32 %v1059, %v1067
        %v1069 = vmul.f32 %v1068, 1.442695
        %v1070 = vpow.pop %v1069
        %v1071 = vsel %vm1064, %v1070, 0.0
        %1072 = vadd.xlane.f32.xlu0 %v1071
        %v1073 = vpop.xlane.xlu0 %1072
        %v1074 = vrcp.pop %v1073
        %v1075 = vmul.f32 %v1070, %v1074
        %v1076 = vpack.c.bf16 %v1075, %v1075
        %v1077 = vld [vmem:[%s2] sm:$0xf]
        %v1078 = vld [vmem:[%s2 + $0x4] sm:$0xf]
        %v1079 = vld [vmem:[%s2 + $0x8] sm:$0xf]
        %v1080 = vld [vmem:[%s2 + $0xc] sm:$0xf]
        %v1081 = vld [vmem:[%s2 + $0x10] sm:$0xf]
        %v1082 = vld [vmem:[%s2 + $0x14] sm:$0xf]
        %v1083 = vld [vmem:[%s2 + $0x18] sm:$0xf]
        %v1084 = vld [vmem:[%s2 + $0x1c] sm:$0xf]
        %v1085 = vld [vmem:[%s2 + $0x20] sm:$0xf]
        %v1086 = vld [vmem:[%s2 + $0x24] sm:$0xf]
        %v1087 = vld [vmem:[%s2 + $0x28] sm:$0xf]
        %v1088 = vld [vmem:[%s2 + $0x2c] sm:$0xf]
        %v1089 = vld [vmem:[%s2 + $0x30] sm:$0xf]
        %v1090 = vld [vmem:[%s2 + $0x34] sm:$0xf]
        %v1091 = vld [vmem:[%s2 + $0x38] sm:$0xf]
        %v1092 = vld [vmem:[%s2 + $0x3c] sm:$0xf]
        %v1109 = vunpack.c.l.b16 %v1077
        %v1110 = vunpack.c.l.b16 %v1078
        %v1111 = vunpack.c.l.b16 %v1079
        %v1112 = vunpack.c.l.b16 %v1080
        %v1113 = vunpack.c.l.b16 %v1081
        %v1114 = vunpack.c.l.b16 %v1082
        %v1115 = vunpack.c.l.b16 %v1083
        %v1116 = vunpack.c.l.b16 %v1084
        %v1117 = vunpack.c.l.b16 %v1085
        %v1118 = vunpack.c.l.b16 %v1086
        %v1119 = vunpack.c.l.b16 %v1087
        %v1120 = vunpack.c.l.b16 %v1088
        %v1121 = vunpack.c.l.b16 %v1089
        %v1122 = vunpack.c.l.b16 %v1090
        %v1123 = vunpack.c.l.b16 %v1091
        %v1124 = vunpack.c.l.b16 %v1092
        %v1125 = vpack.c.b16 %v1110, %v1109
        %v1126 = vpack.c.b16 %v1112, %v1111
        %v1127 = vpack.c.b16 %v1114, %v1113
        %v1128 = vpack.c.b16 %v1116, %v1115
        %v1129 = vpack.c.b16 %v1118, %v1117
        %v1130 = vpack.c.b16 %v1120, %v1119
        %v1131 = vpack.c.b16 %v1122, %v1121
        %v1132 = vpack.c.b16 %v1124, %v1123
        %1141 = vmatprep.subr.bf16.mxu0 0
        %1142 = vmatpush1.bf16.msra.mxu0 %v1132
        %1143 = vmatprep.subr.bf16.mxu0 0
        %1144 = vmatpush1.bf16.msra.mxu0 %v1131
        %1145 = vmatprep.subr.bf16.mxu0 0
        %1146 = vmatpush1.bf16.msra.mxu0 %v1130
        %1147 = vmatprep.subr.bf16.mxu0 0
        %1148 = vmatpush1.bf16.msra.mxu0 %v1129
        %1149 = vmatprep.subr.bf16.mxu0 0
        %1150 = vmatpush1.bf16.msra.mxu0 %v1128
        %1151 = vmatprep.subr.bf16.mxu0 0
        %1152 = vmatpush1.bf16.msra.mxu0 %v1127
        %1153 = vmatprep.subr.bf16.mxu0 0
        %1154 = vmatpush1.bf16.msra.mxu0 %v1126
        %1155 = vmatprep.subr.bf16.mxu0 0
        %1156 = vmatpush1.bf16.msra.mxu0 %v1125
        %1157 = vmatprep.subr.bf16.mxu0 0
        %1158 = vmatpush2.bf16.msra.mxu0 0
        %1159 = vmatprep.subr.bf16.mxu0 0
        %1160 = vmatpush2.bf16.msra.mxu0 0
        %1161 = vmatprep.subr.bf16.mxu0 0
        %1162 = vmatpush2.bf16.msra.mxu0 0
        %1163 = vmatprep.subr.bf16.mxu0 0
        %1164 = vmatpush2.bf16.msra.mxu0 0
        %1165 = vmatprep.subr.bf16.mxu0 0
        %1166 = vmatpush2.bf16.msra.mxu0 0
        %1167 = vmatprep.subr.bf16.mxu0 0
        %1168 = vmatpush2.bf16.msra.mxu0 0
        %1169 = vmatprep.subr.bf16.mxu0 0
        %1170 = vmatpush2.bf16.msra.mxu0 0
        %1171 = vmatprep.subr.bf16.mxu0 0
        %1172 = vmatpush2.bf16.msra.mxu0 0
        %1173 = vmatprep.mubr.bf16.mxu0 0
        %1174 = vmatmul.mubr.bf16.gmra.mxu0 %v1076
        %v1175 = vpop.f32.mrf.mxu0
        %v1176 = vadd.f32 0.0, %v1175
        %v1177 = vpop.f32.mrf.mxu0
        %v1178 = vpop.f32.mrf.mxu0
        %v1179 = vpop.f32.mrf.mxu0
        %1180 = vdwg.mxu0
        %vm1181 = vcmask 256000
        %1182 = vst.msk [vmem:[#allocation2] sm:$0x7] %vm1181, %v1176
        %s1183 = scalar_lea.vmem %s1, 16
        %v1184 = vld [vmem:[%s1183] sm:$0xf]
        %v1185 = vld [vmem:[%s1183 + $0x4] sm:$0xf]
        %v1186 = vld [vmem:[%s1183 + $0x8] sm:$0xf]
        %v1187 = vld [vmem:[%s1183 + $0xc] sm:$0xf]
        %1189 = vrot.lane.b32.xlu0 %v1003, 96
        %v1190 = vpop.permute.xlu0 %1189
        %v1195 = vunpack.c.l.b16 %v1184
        %v1196 = vunpack.c.l.b16 %v1185
        %v1197 = vunpack.c.l.b16 %v1186
        %v1198 = vunpack.c.l.b16 %v1187
        %v1199 = vpack.c.b16 %v1196, %v1195
        %v1200 = vpack.c.b16 %v1198, %v1197
        %v1204 = vsel %vm1020, %v1190, 0
        %1206 = vmatprep.subr.bf16.mxu0 0
        %1207 = vmatpush1.bf16.msra.mxu0 0
        %1208 = vmatprep.subr.bf16.mxu0 0
        %1209 = vmatpush1.bf16.msra.mxu0 0
        %1210 = vmatprep.subr.bf16.mxu0 0
        %1211 = vmatpush1.bf16.msra.mxu0 0
        %1212 = vmatprep.subr.bf16.mxu0 0
        %1213 = vmatpush1.bf16.msra.mxu0 0
        %1214 = vmatprep.subr.bf16.mxu0 0
        %1215 = vmatpush1.bf16.msra.mxu0 0
        %1216 = vmatprep.subr.bf16.mxu0 0
        %1217 = vmatpush1.bf16.msra.mxu0 0
        %1218 = vmatprep.subr.bf16.mxu0 0
        %1219 = vmatpush1.bf16.msra.mxu0 %v1200
        %1220 = vmatprep.subr.bf16.mxu0 0
        %1221 = vmatpush1.bf16.msra.mxu0 %v1199
        %1222 = vmatprep.subr.bf16.mxu0 0
        %1223 = vmatpush2.bf16.msra.mxu0 0
        %1224 = vmatprep.subr.bf16.mxu0 0
        %1225 = vmatpush2.bf16.msra.mxu0 0
        %1226 = vmatprep.subr.bf16.mxu0 0
        %1227 = vmatpush2.bf16.msra.mxu0 0
        %1228 = vmatprep.subr.bf16.mxu0 0
        %1229 = vmatpush2.bf16.msra.mxu0 0
        %1230 = vmatprep.subr.bf16.mxu0 0
        %1231 = vmatpush2.bf16.msra.mxu0 0
        %1232 = vmatprep.subr.bf16.mxu0 0
        %1233 = vmatpush2.bf16.msra.mxu0 0
        %1234 = vmatprep.subr.bf16.mxu0 0
        %1235 = vmatpush2.bf16.msra.mxu0 0
        %1236 = vmatprep.subr.bf16.mxu0 0
        %1237 = vmatpush2.bf16.msra.mxu0 0
        %1238 = vmatprep.mubr.bf16.mxu0 0
        %1239 = vmatmul.mubr.bf16.gmra.mxu0 %v1204
        %v1240 = vpop.f32.mrf.mxu0
        %v1241 = vadd.f32 0.0, %v1240
        %v1242 = vpop.f32.mrf.mxu0
        %v1243 = vpop.f32.mrf.mxu0
        %v1244 = vpop.f32.mrf.mxu0
        %1245 = vdwg.mxu0
        %v1246 = vsel %vm1064, %v1241, -inf
        %1247 = vmax.xlane.f32.xlu0 %v1246
        %v1248 = vpop.xlane.xlu0 %1247
        %v1249 = vsub.f32 %v1241, %v1248
        %v1250 = vmul.f32 %v1249, 1.442695
        %v1251 = vpow.pop %v1250
        %v1252 = vsel %vm1064, %v1251, 0.0
        %1253 = vadd.xlane.f32.xlu0 %v1252
        %v1254 = vpop.xlane.xlu0 %1253
        %v1255 = vrcp.pop %v1254
        %v1256 = vmul.f32 %v1251, %v1255
        %v1257 = vpack.c.bf16 %v1256, %v1256
        %s1258 = scalar_lea.vmem %s2, 64
        %v1259 = vld [vmem:[%s1258] sm:$0xf]
        %v1260 = vld [vmem:[%s1258 + $0x4] sm:$0xf]
        %v1261 = vld [vmem:[%s1258 + $0x8] sm:$0xf]
        %v1262 = vld [vmem:[%s1258 + $0xc] sm:$0xf]
        %v1263 = vld [vmem:[%s1258 + $0x10] sm:$0xf]
        %v1264 = vld [vmem:[%s1258 + $0x14] sm:$0xf]
        %v1265 = vld [vmem:[%s1258 + $0x18] sm:$0xf]
        %v1266 = vld [vmem:[%s1258 + $0x1c] sm:$0xf]
        %v1267 = vld [vmem:[%s1258 + $0x20] sm:$0xf]
        %v1268 = vld [vmem:[%s1258 + $0x24] sm:$0xf]
        %v1269 = vld [vmem:[%s1258 + $0x28] sm:$0xf]
        %v1270 = vld [vmem:[%s1258 + $0x2c] sm:$0xf]
        %v1271 = vld [vmem:[%s1258 + $0x30] sm:$0xf]
        %v1272 = vld [vmem:[%s1258 + $0x34] sm:$0xf]
        %v1273 = vld [vmem:[%s1258 + $0x38] sm:$0xf]
        %v1274 = vld [vmem:[%s1258 + $0x3c] sm:$0xf]
        %v1291 = vunpack.c.l.b16 %v1259
        %v1292 = vunpack.c.l.b16 %v1260
        %v1293 = vunpack.c.l.b16 %v1261
        %v1294 = vunpack.c.l.b16 %v1262
        %v1295 = vunpack.c.l.b16 %v1263
        %v1296 = vunpack.c.l.b16 %v1264
        %v1297 = vunpack.c.l.b16 %v1265
        %v1298 = vunpack.c.l.b16 %v1266
        %v1299 = vunpack.c.l.b16 %v1267
        %v1300 = vunpack.c.l.b16 %v1268
        %v1301 = vunpack.c.l.b16 %v1269
        %v1302 = vunpack.c.l.b16 %v1270
        %v1303 = vunpack.c.l.b16 %v1271
        %v1304 = vunpack.c.l.b16 %v1272
        %v1305 = vunpack.c.l.b16 %v1273
        %v1306 = vunpack.c.l.b16 %v1274
        %v1307 = vpack.c.b16 %v1292, %v1291
        %v1308 = vpack.c.b16 %v1294, %v1293
        %v1309 = vpack.c.b16 %v1296, %v1295
        %v1310 = vpack.c.b16 %v1298, %v1297
        %v1311 = vpack.c.b16 %v1300, %v1299
        %v1312 = vpack.c.b16 %v1302, %v1301
        %v1313 = vpack.c.b16 %v1304, %v1303
        %v1314 = vpack.c.b16 %v1306, %v1305
        %1323 = vmatprep.subr.bf16.mxu0 0
        %1324 = vmatpush1.bf16.msra.mxu0 %v1314
        %1325 = vmatprep.subr.bf16.mxu0 0
        %1326 = vmatpush1.bf16.msra.mxu0 %v1313
        %1327 = vmatprep.subr.bf16.mxu0 0
        %1328 = vmatpush1.bf16.msra.mxu0 %v1312
        %1329 = vmatprep.subr.bf16.mxu0 0
        %1330 = vmatpush1.bf16.msra.mxu0 %v1311
        %1331 = vmatprep.subr.bf16.mxu0 0
        %1332 = vmatpush1.bf16.msra.mxu0 %v1310
        %1333 = vmatprep.subr.bf16.mxu0 0
        %1334 = vmatpush1.bf16.msra.mxu0 %v1309
        %1335 = vmatprep.subr.bf16.mxu0 0
        %1336 = vmatpush1.bf16.msra.mxu0 %v1308
        %1337 = vmatprep.subr.bf16.mxu0 0
        %1338 = vmatpush1.bf16.msra.mxu0 %v1307
        %1339 = vmatprep.subr.bf16.mxu0 0
        %1340 = vmatpush2.bf16.msra.mxu0 0
        %1341 = vmatprep.subr.bf16.mxu0 0
        %1342 = vmatpush2.bf16.msra.mxu0 0
        %1343 = vmatprep.subr.bf16.mxu0 0
        %1344 = vmatpush2.bf16.msra.mxu0 0
        %1345 = vmatprep.subr.bf16.mxu0 0
        %1346 = vmatpush2.bf16.msra.mxu0 0
        %1347 = vmatprep.subr.bf16.mxu0 0
        %1348 = vmatpush2.bf16.msra.mxu0 0
        %1349 = vmatprep.subr.bf16.mxu0 0
        %1350 = vmatpush2.bf16.msra.mxu0 0
        %1351 = vmatprep.subr.bf16.mxu0 0
        %1352 = vmatpush2.bf16.msra.mxu0 0
        %1353 = vmatprep.subr.bf16.mxu0 0
        %1354 = vmatpush2.bf16.msra.mxu0 0
        %1355 = vmatprep.mubr.bf16.mxu0 0
        %1356 = vmatmul.mubr.bf16.gmra.mxu0 %v1257
        %v1357 = vpop.f32.mrf.mxu0
        %v1358 = vadd.f32 0.0, %v1357
        %v1359 = vpop.f32.mrf.mxu0
        %v1360 = vpop.f32.mrf.mxu0
        %v1361 = vpop.f32.mrf.mxu0
        %1362 = vdwg.mxu0
        %1364 = vrot.lane.b32.xlu0 %v1358, 32
        %v1365 = vpop.permute.xlu0 %1364
        %vm1367 = vcmask 518400
        %1368 = vst.msk [vmem:[#allocation2] sm:$0x7] %vm1367, %v1365
        %s1369 = scalar_lea.vmem %s1, 32
        %v1370 = vld [vmem:[%s1369] sm:$0xf]
        %v1371 = vld [vmem:[%s1369 + $0x4] sm:$0xf]
        %v1372 = vld [vmem:[%s1369 + $0x8] sm:$0xf]
        %v1373 = vld [vmem:[%s1369 + $0xc] sm:$0xf]
        %1374 = vrot.lane.b32.xlu0 %v1003, 64
        %v1375 = vpop.permute.xlu0 %1374
        %v1380 = vunpack.c.l.b16 %v1370
        %v1381 = vunpack.c.l.b16 %v1371
        %v1382 = vunpack.c.l.b16 %v1372
        %v1383 = vunpack.c.l.b16 %v1373
        %v1384 = vpack.c.b16 %v1381, %v1380
        %v1385 = vpack.c.b16 %v1383, %v1382
        %v1389 = vsel %vm1020, %v1375, 0
        %1391 = vmatprep.subr.bf16.mxu0 0
        %1392 = vmatpush1.bf16.msra.mxu0 0
        %1393 = vmatprep.subr.bf16.mxu0 0
        %1394 = vmatpush1.bf16.msra.mxu0 0
        %1395 = vmatprep.subr.bf16.mxu0 0
        %1396 = vmatpush1.bf16.msra.mxu0 0
        %1397 = vmatprep.subr.bf16.mxu0 0
        %1398 = vmatpush1.bf16.msra.mxu0 0
        %1399 = vmatprep.subr.bf16.mxu0 0
        %1400 = vmatpush1.bf16.msra.mxu0 0
        %1401 = vmatprep.subr.bf16.mxu0 0
        %1402 = vmatpush1.bf16.msra.mxu0 0
        %1403 = vmatprep.subr.bf16.mxu0 0
        %1404 = vmatpush1.bf16.msra.mxu0 %v1385
        %1405 = vmatprep.subr.bf16.mxu0 0
        %1406 = vmatpush1.bf16.msra.mxu0 %v1384
        %1407 = vmatprep.subr.bf16.mxu0 0
        %1408 = vmatpush2.bf16.msra.mxu0 0
        %1409 = vmatprep.subr.bf16.mxu0 0
        %1410 = vmatpush2.bf16.msra.mxu0 0
        %1411 = vmatprep.subr.bf16.mxu0 0
        %1412 = vmatpush2.bf16.msra.mxu0 0
        %1413 = vmatprep.subr.bf16.mxu0 0
        %1414 = vmatpush2.bf16.msra.mxu0 0
        %1415 = vmatprep.subr.bf16.mxu0 0
        %1416 = vmatpush2.bf16.msra.mxu0 0
        %1417 = vmatprep.subr.bf16.mxu0 0
        %1418 = vmatpush2.bf16.msra.mxu0 0
        %1419 = vmatprep.subr.bf16.mxu0 0
        %1420 = vmatpush2.bf16.msra.mxu0 0
        %1421 = vmatprep.subr.bf16.mxu0 0
        %1422 = vmatpush2.bf16.msra.mxu0 0
        %1423 = vmatprep.mubr.bf16.mxu0 0
        %1424 = vmatmul.mubr.bf16.gmra.mxu0 %v1389
        %v1425 = vpop.f32.mrf.mxu0
        %v1426 = vadd.f32 0.0, %v1425
        %v1427 = vpop.f32.mrf.mxu0
        %v1428 = vpop.f32.mrf.mxu0
        %v1429 = vpop.f32.mrf.mxu0
        %1430 = vdwg.mxu0
        %v1431 = vsel %vm1064, %v1426, -inf
        %1432 = vmax.xlane.f32.xlu0 %v1431
        %v1433 = vpop.xlane.xlu0 %1432
        %v1434 = vsub.f32 %v1426, %v1433
        %v1435 = vmul.f32 %v1434, 1.442695
        %v1436 = vpow.pop %v1435
        %v1437 = vsel %vm1064, %v1436, 0.0
        %1438 = vadd.xlane.f32.xlu0 %v1437
        %v1439 = vpop.xlane.xlu0 %1438
        %v1440 = vrcp.pop %v1439
        %v1441 = vmul.f32 %v1436, %v1440
        %v1442 = vpack.c.bf16 %v1441, %v1441
        %s1443 = scalar_lea.vmem %s2, 128
        %v1444 = vld [vmem:[%s1443] sm:$0xf]
        %v1445 = vld [vmem:[%s1443 + $0x4] sm:$0xf]
        %v1446 = vld [vmem:[%s1443 + $0x8] sm:$0xf]
        %v1447 = vld [vmem:[%s1443 + $0xc] sm:$0xf]
        %v1448 = vld [vmem:[%s1443 + $0x10] sm:$0xf]
        %v1449 = vld [vmem:[%s1443 + $0x14] sm:$0xf]
        %v1450 = vld [vmem:[%s1443 + $0x18] sm:$0xf]
        %v1451 = vld [vmem:[%s1443 + $0x1c] sm:$0xf]
        %v1452 = vld [vmem:[%s1443 + $0x20] sm:$0xf]
        %v1453 = vld [vmem:[%s1443 + $0x24] sm:$0xf]
        %v1454 = vld [vmem:[%s1443 + $0x28] sm:$0xf]
        %v1455 = vld [vmem:[%s1443 + $0x2c] sm:$0xf]
        %v1456 = vld [vmem:[%s1443 + $0x30] sm:$0xf]
        %v1457 = vld [vmem:[%s1443 + $0x34] sm:$0xf]
        %v1458 = vld [vmem:[%s1443 + $0x38] sm:$0xf]
        %v1459 = vld [vmem:[%s1443 + $0x3c] sm:$0xf]
        %v1476 = vunpack.c.l.b16 %v1444
        %v1477 = vunpack.c.l.b16 %v1445
        %v1478 = vunpack.c.l.b16 %v1446
        %v1479 = vunpack.c.l.b16 %v1447
        %v1480 = vunpack.c.l.b16 %v1448
        %v1481 = vunpack.c.l.b16 %v1449
        %v1482 = vunpack.c.l.b16 %v1450
        %v1483 = vunpack.c.l.b16 %v1451
        %v1484 = vunpack.c.l.b16 %v1452
        %v1485 = vunpack.c.l.b16 %v1453
        %v1486 = vunpack.c.l.b16 %v1454
        %v1487 = vunpack.c.l.b16 %v1455
        %v1488 = vunpack.c.l.b16 %v1456
        %v1489 = vunpack.c.l.b16 %v1457
        %v1490 = vunpack.c.l.b16 %v1458
        %v1491 = vunpack.c.l.b16 %v1459
        %v1492 = vpack.c.b16 %v1477, %v1476
        %v1493 = vpack.c.b16 %v1479, %v1478
        %v1494 = vpack.c.b16 %v1481, %v1480
        %v1495 = vpack.c.b16 %v1483, %v1482
        %v1496 = vpack.c.b16 %v1485, %v1484
        %v1497 = vpack.c.b16 %v1487, %v1486
        %v1498 = vpack.c.b16 %v1489, %v1488
        %v1499 = vpack.c.b16 %v1491, %v1490
        %1508 = vmatprep.subr.bf16.mxu0 0
        %1509 = vmatpush1.bf16.msra.mxu0 %v1499
        %1510 = vmatprep.subr.bf16.mxu0 0
        %1511 = vmatpush1.bf16.msra.mxu0 %v1498
        %1512 = vmatprep.subr.bf16.mxu0 0
        %1513 = vmatpush1.bf16.msra.mxu0 %v1497
        %1514 = vmatprep.subr.bf16.mxu0 0
        %1515 = vmatpush1.bf16.msra.mxu0 %v1496
        %1516 = vmatprep.subr.bf16.mxu0 0
        %1517 = vmatpush1.bf16.msra.mxu0 %v1495
        %1518 = vmatprep.subr.bf16.mxu0 0
        %1519 = vmatpush1.bf16.msra.mxu0 %v1494
        %1520 = vmatprep.subr.bf16.mxu0 0
        %1521 = vmatpush1.bf16.msra.mxu0 %v1493
        %1522 = vmatprep.subr.bf16.mxu0 0
        %1523 = vmatpush1.bf16.msra.mxu0 %v1492
        %1524 = vmatprep.subr.bf16.mxu0 0
        %1525 = vmatpush2.bf16.msra.mxu0 0
        %1526 = vmatprep.subr.bf16.mxu0 0
        %1527 = vmatpush2.bf16.msra.mxu0 0
        %1528 = vmatprep.subr.bf16.mxu0 0
        %1529 = vmatpush2.bf16.msra.mxu0 0
        %1530 = vmatprep.subr.bf16.mxu0 0
        %1531 = vmatpush2.bf16.msra.mxu0 0
        %1532 = vmatprep.subr.bf16.mxu0 0
        %1533 = vmatpush2.bf16.msra.mxu0 0
        %1534 = vmatprep.subr.bf16.mxu0 0
        %1535 = vmatpush2.bf16.msra.mxu0 0
        %1536 = vmatprep.subr.bf16.mxu0 0
        %1537 = vmatpush2.bf16.msra.mxu0 0
        %1538 = vmatprep.subr.bf16.mxu0 0
        %1539 = vmatpush2.bf16.msra.mxu0 0
        %1540 = vmatprep.mubr.bf16.mxu0 0
        %1541 = vmatmul.mubr.bf16.gmra.mxu0 %v1442
        %v1542 = vpop.f32.mrf.mxu0
        %v1543 = vadd.f32 0.0, %v1542
        %v1544 = vpop.f32.mrf.mxu0
        %v1545 = vpop.f32.mrf.mxu0
        %v1546 = vpop.f32.mrf.mxu0
        %1547 = vdwg.mxu0
        %1549 = vrot.lane.b32.xlu0 %v1543, 64
        %v1550 = vpop.permute.xlu0 %1549
        %vm1552 = vcmask 780800
        %1553 = vst.msk [vmem:[#allocation2] sm:$0x7] %vm1552, %v1550
        %s1554 = scalar_lea.vmem %s1, 48
        %v1555 = vld [vmem:[%s1554] sm:$0xf]
        %v1556 = vld [vmem:[%s1554 + $0x4] sm:$0xf]
        %v1557 = vld [vmem:[%s1554 + $0x8] sm:$0xf]
        %v1558 = vld [vmem:[%s1554 + $0xc] sm:$0xf]
        %1559 = vrot.lane.b32.xlu0 %v1003, 32
        %v1560 = vpop.permute.xlu0 %1559
        %v1565 = vunpack.c.l.b16 %v1555
        %v1566 = vunpack.c.l.b16 %v1556
        %v1567 = vunpack.c.l.b16 %v1557
        %v1568 = vunpack.c.l.b16 %v1558
        %v1569 = vpack.c.b16 %v1566, %v1565
        %v1570 = vpack.c.b16 %v1568, %v1567
        %v1574 = vsel %vm1020, %v1560, 0
        %1576 = vmatprep.subr.bf16.mxu0 0
        %1577 = vmatpush1.bf16.msra.mxu0 0
        %1578 = vmatprep.subr.bf16.mxu0 0
        %1579 = vmatpush1.bf16.msra.mxu0 0
        %1580 = vmatprep.subr.bf16.mxu0 0
        %1581 = vmatpush1.bf16.msra.mxu0 0
        %1582 = vmatprep.subr.bf16.mxu0 0
        %1583 = vmatpush1.bf16.msra.mxu0 0
        %1584 = vmatprep.subr.bf16.mxu0 0
        %1585 = vmatpush1.bf16.msra.mxu0 0
        %1586 = vmatprep.subr.bf16.mxu0 0
        %1587 = vmatpush1.bf16.msra.mxu0 0
        %1588 = vmatprep.subr.bf16.mxu0 0
        %1589 = vmatpush1.bf16.msra.mxu0 %v1570
        %1590 = vmatprep.subr.bf16.mxu0 0
        %1591 = vmatpush1.bf16.msra.mxu0 %v1569
        %1592 = vmatprep.subr.bf16.mxu0 0
        %1593 = vmatpush2.bf16.msra.mxu0 0
        %1594 = vmatprep.subr.bf16.mxu0 0
        %1595 = vmatpush2.bf16.msra.mxu0 0
        %1596 = vmatprep.subr.bf16.mxu0 0
        %1597 = vmatpush2.bf16.msra.mxu0 0
        %1598 = vmatprep.subr.bf16.mxu0 0
        %1599 = vmatpush2.bf16.msra.mxu0 0
        %1600 = vmatprep.subr.bf16.mxu0 0
        %1601 = vmatpush2.bf16.msra.mxu0 0
        %1602 = vmatprep.subr.bf16.mxu0 0
        %1603 = vmatpush2.bf16.msra.mxu0 0
        %1604 = vmatprep.subr.bf16.mxu0 0
        %1605 = vmatpush2.bf16.msra.mxu0 0
        %1606 = vmatprep.subr.bf16.mxu0 0
        %1607 = vmatpush2.bf16.msra.mxu0 0
        %1608 = vmatprep.mubr.bf16.mxu0 0
        %1609 = vmatmul.mubr.bf16.gmra.mxu0 %v1574
        %v1610 = vpop.f32.mrf.mxu0
        %v1611 = vadd.f32 0.0, %v1610
        %v1612 = vpop.f32.mrf.mxu0
        %v1613 = vpop.f32.mrf.mxu0
        %v1614 = vpop.f32.mrf.mxu0
        %1615 = vdwg.mxu0
        %v1616 = vsel %vm1064, %v1611, -inf
        %1617 = vmax.xlane.f32.xlu0 %v1616
        %v1618 = vpop.xlane.xlu0 %1617
        %v1619 = vsub.f32 %v1611, %v1618
        %v1620 = vmul.f32 %v1619, 1.442695
        %v1621 = vpow.pop %v1620
        %v1622 = vsel %vm1064, %v1621, 0.0
        %1623 = vadd.xlane.f32.xlu0 %v1622
        %v1624 = vpop.xlane.xlu0 %1623
        %v1625 = vrcp.pop %v1624
        %v1626 = vmul.f32 %v1621, %v1625
        %v1627 = vpack.c.bf16 %v1626, %v1626
        %s1628 = scalar_lea.vmem %s2, 192
        %v1629 = vld [vmem:[%s1628] sm:$0xf]
        %v1630 = vld [vmem:[%s1628 + $0x4] sm:$0xf]
        %v1631 = vld [vmem:[%s1628 + $0x8] sm:$0xf]
        %v1632 = vld [vmem:[%s1628 + $0xc] sm:$0xf]
        %v1633 = vld [vmem:[%s1628 + $0x10] sm:$0xf]
        %v1634 = vld [vmem:[%s1628 + $0x14] sm:$0xf]
        %v1635 = vld [vmem:[%s1628 + $0x18] sm:$0xf]
        %v1636 = vld [vmem:[%s1628 + $0x1c] sm:$0xf]
        %v1637 = vld [vmem:[%s1628 + $0x20] sm:$0xf]
        %v1638 = vld [vmem:[%s1628 + $0x24] sm:$0xf]
        %v1639 = vld [vmem:[%s1628 + $0x28] sm:$0xf]
        %v1640 = vld [vmem:[%s1628 + $0x2c] sm:$0xf]
        %v1641 = vld [vmem:[%s1628 + $0x30] sm:$0xf]
        %v1642 = vld [vmem:[%s1628 + $0x34] sm:$0xf]
        %v1643 = vld [vmem:[%s1628 + $0x38] sm:$0xf]
        %v1644 = vld [vmem:[%s1628 + $0x3c] sm:$0xf]
        %v1661 = vunpack.c.l.b16 %v1629
        %v1662 = vunpack.c.l.b16 %v1630
        %v1663 = vunpack.c.l.b16 %v1631
        %v1664 = vunpack.c.l.b16 %v1632
        %v1665 = vunpack.c.l.b16 %v1633
        %v1666 = vunpack.c.l.b16 %v1634
        %v1667 = vunpack.c.l.b16 %v1635
        %v1668 = vunpack.c.l.b16 %v1636
        %v1669 = vunpack.c.l.b16 %v1637
        %v1670 = vunpack.c.l.b16 %v1638
        %v1671 = vunpack.c.l.b16 %v1639
        %v1672 = vunpack.c.l.b16 %v1640
        %v1673 = vunpack.c.l.b16 %v1641
        %v1674 = vunpack.c.l.b16 %v1642
        %v1675 = vunpack.c.l.b16 %v1643
        %v1676 = vunpack.c.l.b16 %v1644
        %v1677 = vpack.c.b16 %v1662, %v1661
        %v1678 = vpack.c.b16 %v1664, %v1663
        %v1679 = vpack.c.b16 %v1666, %v1665
        %v1680 = vpack.c.b16 %v1668, %v1667
        %v1681 = vpack.c.b16 %v1670, %v1669
        %v1682 = vpack.c.b16 %v1672, %v1671
        %v1683 = vpack.c.b16 %v1674, %v1673
        %v1684 = vpack.c.b16 %v1676, %v1675
        %1693 = vmatprep.subr.bf16.mxu0 0
        %1694 = vmatpush1.bf16.msra.mxu0 %v1684
        %1695 = vmatprep.subr.bf16.mxu0 0
        %1696 = vmatpush1.bf16.msra.mxu0 %v1683
        %1697 = vmatprep.subr.bf16.mxu0 0
        %1698 = vmatpush1.bf16.msra.mxu0 %v1682
        %1699 = vmatprep.subr.bf16.mxu0 0
        %1700 = vmatpush1.bf16.msra.mxu0 %v1681
        %1701 = vmatprep.subr.bf16.mxu0 0
        %1702 = vmatpush1.bf16.msra.mxu0 %v1680
        %1703 = vmatprep.subr.bf16.mxu0 0
        %1704 = vmatpush1.bf16.msra.mxu0 %v1679
        %1705 = vmatprep.subr.bf16.mxu0 0
        %1706 = vmatpush1.bf16.msra.mxu0 %v1678
        %1707 = vmatprep.subr.bf16.mxu0 0
        %1708 = vmatpush1.bf16.msra.mxu0 %v1677
        %1709 = vmatprep.subr.bf16.mxu0 0
        %1710 = vmatpush2.bf16.msra.mxu0 0
        %1711 = vmatprep.subr.bf16.mxu0 0
        %1712 = vmatpush2.bf16.msra.mxu0 0
        %1713 = vmatprep.subr.bf16.mxu0 0
        %1714 = vmatpush2.bf16.msra.mxu0 0
        %1715 = vmatprep.subr.bf16.mxu0 0
        %1716 = vmatpush2.bf16.msra.mxu0 0
        %1717 = vmatprep.subr.bf16.mxu0 0
        %1718 = vmatpush2.bf16.msra.mxu0 0
        %1719 = vmatprep.subr.bf16.mxu0 0
        %1720 = vmatpush2.bf16.msra.mxu0 0
        %1721 = vmatprep.subr.bf16.mxu0 0
        %1722 = vmatpush2.bf16.msra.mxu0 0
        %1723 = vmatprep.subr.bf16.mxu0 0
        %1724 = vmatpush2.bf16.msra.mxu0 0
        %1725 = vmatprep.mubr.bf16.mxu0 0
        %1726 = vmatmul.mubr.bf16.gmra.mxu0 %v1627
        %v1727 = vpop.f32.mrf.mxu0
        %v1728 = vadd.f32 0.0, %v1727
        %v1729 = vpop.f32.mrf.mxu0
        %v1730 = vpop.f32.mrf.mxu0
        %v1731 = vpop.f32.mrf.mxu0
        %1732 = vdwg.mxu0
        %1734 = vrot.lane.b32.xlu0 %v1728, 96
        %v1735 = vpop.permute.xlu0 %1734
        %vm1737 = vcmask 1043200
        %1738 = vst.msk [vmem:[#allocation2] sm:$0x7] %vm1737, %v1735
        %v1739 = vld [vmem:[#allocation2] sm:$0x7]
        %v1740 = vpack.c.bf16 %v1739, %v1739
        %v1741 = vld [vmem:[#allocation6] sm:$0xf]
        %v1742 = vld [vmem:[#allocation6 + $0x4] sm:$0xf]
        %v1743 = vld [vmem:[#allocation6 + $0x8] sm:$0xf]
        %v1744 = vld [vmem:[#allocation6 + $0xc] sm:$0xf]
        %v1745 = vld [vmem:[#allocation6 + $0x10] sm:$0xf]
        %v1746 = vld [vmem:[#allocation6 + $0x14] sm:$0xf]
        %v1747 = vld [vmem:[#allocation6 + $0x18] sm:$0xf]
        %v1748 = vld [vmem:[#allocation6 + $0x1c] sm:$0xf]
        %v1749 = vld [vmem:[#allocation6 + $0x20] sm:$0xf]
        %v1750 = vld [vmem:[#allocation6 + $0x24] sm:$0xf]
        %v1751 = vld [vmem:[#allocation6 + $0x28] sm:$0xf]
        %v1752 = vld [vmem:[#allocation6 + $0x2c] sm:$0xf]
        %v1753 = vld [vmem:[#allocation6 + $0x30] sm:$0xf]
        %v1754 = vld [vmem:[#allocation6 + $0x34] sm:$0xf]
        %v1755 = vld [vmem:[#allocation6 + $0x38] sm:$0xf]
        %v1756 = vld [vmem:[#allocation6 + $0x3c] sm:$0xf]
        %v1757 = vld [vmem:[%s12] sm:$0x1]
        %v1759 = vlaneseq
        %v1760 = vshrl.u32 %v1759, 7
        %v1761 = vsub.s32 0, %v1760
        %v1762 = vrot.slane %v1757, %v1761
        %v1780 = vunpack.c.l.b16 %v1741
        %v1781 = vunpack.c.l.b16 %v1742
        %v1782 = vunpack.c.l.b16 %v1743
        %v1783 = vunpack.c.l.b16 %v1744
        %v1784 = vunpack.c.l.b16 %v1745
        %v1785 = vunpack.c.l.b16 %v1746
        %v1786 = vunpack.c.l.b16 %v1747
        %v1787 = vunpack.c.l.b16 %v1748
        %v1788 = vunpack.c.l.b16 %v1749
        %v1789 = vunpack.c.l.b16 %v1750
        %v1790 = vunpack.c.l.b16 %v1751
        %v1791 = vunpack.c.l.b16 %v1752
        %v1792 = vunpack.c.l.b16 %v1753
        %v1793 = vunpack.c.l.b16 %v1754
        %v1794 = vunpack.c.l.b16 %v1755
        %v1795 = vunpack.c.l.b16 %v1756
        %v1796 = vpack.c.b16 %v1781, %v1780
        %v1797 = vpack.c.b16 %v1783, %v1782
        %v1798 = vpack.c.b16 %v1785, %v1784
        %v1799 = vpack.c.b16 %v1787, %v1786
        %v1800 = vpack.c.b16 %v1789, %v1788
        %v1801 = vpack.c.b16 %v1791, %v1790
        %v1802 = vpack.c.b16 %v1793, %v1792
        %v1803 = vpack.c.b16 %v1795, %v1794
        %1812 = vmatprep.subr.bf16.mxu0 0
        %1813 = vmatpush1.bf16.msra.mxu0 %v1803
        %1814 = vmatprep.subr.bf16.mxu0 0
        %1815 = vmatpush1.bf16.msra.mxu0 %v1802
        %1816 = vmatprep.subr.bf16.mxu0 0
        %1817 = vmatpush1.bf16.msra.mxu0 %v1801
        %1818 = vmatprep.subr.bf16.mxu0 0
        %1819 = vmatpush1.bf16.msra.mxu0 %v1800
        %1820 = vmatprep.subr.bf16.mxu0 0
        %1821 = vmatpush1.bf16.msra.mxu0 %v1799
        %1822 = vmatprep.subr.bf16.mxu0 0
        %1823 = vmatpush1.bf16.msra.mxu0 %v1798
        %1824 = vmatprep.subr.bf16.mxu0 0
        %1825 = vmatpush1.bf16.msra.mxu0 %v1797
        %1826 = vmatprep.subr.bf16.mxu0 0
        %1827 = vmatpush1.bf16.msra.mxu0 %v1796
        %1828 = vmatprep.subr.bf16.mxu0 0
        %1829 = vmatpush2.bf16.msra.mxu0 0
        %1830 = vmatprep.subr.bf16.mxu0 0
        %1831 = vmatpush2.bf16.msra.mxu0 0
        %1832 = vmatprep.subr.bf16.mxu0 0
        %1833 = vmatpush2.bf16.msra.mxu0 0
        %1834 = vmatprep.subr.bf16.mxu0 0
        %1835 = vmatpush2.bf16.msra.mxu0 0
        %1836 = vmatprep.subr.bf16.mxu0 0
        %1837 = vmatpush2.bf16.msra.mxu0 0
        %1838 = vmatprep.subr.bf16.mxu0 0
        %1839 = vmatpush2.bf16.msra.mxu0 0
        %1840 = vmatprep.subr.bf16.mxu0 0
        %1841 = vmatpush2.bf16.msra.mxu0 0
        %1842 = vmatprep.subr.bf16.mxu0 0
        %1843 = vmatpush2.bf16.msra.mxu0 0
        %1844 = vmatprep.mubr.bf16.mxu0 0
        %1845 = vmatmul.mubr.bf16.gmra.mxu0 %v1740
        %v1846 = vpop.f32.mrf.mxu0
        %v1847 = vadd.f32 %v1762, %v1846
        %v1848 = vpop.f32.mrf.mxu0
        %v1849 = vpop.f32.mrf.mxu0
        %v1850 = vpop.f32.mrf.mxu0
        %1851 = vdwg.mxu0
        %v1852 = vsel %vm1064, %v1847, 0.0
        %v1853 = vrot.slane %v1852, 4
        %v1854 = vadd.f32 %v1852, %v1853
        %v1855 = vrot.slane %v1854, 2
        %v1856 = vadd.f32 %v1854, %v1855
        %v1857 = vrot.slane %v1856, 1
        %v1858 = vadd.f32 %v1856, %v1857
        %v1859 = vld [vmem:[%s557] sm:$0x1]
        %v1860 = vadd.f32 %v1858, %v1859
        %v1861 = vld [vmem:[%s560] sm:$0x1]
        %1863 = vset.pattern.permute.xlu0 0
        %1864 = vperm.xlu0 %1863, %v1861
        %v1865 = vpop.permute.xlu0 %1864
        %v1867 = vlaneseq
        %v1868 = vshrl.u32 %v1867, 7
        %v1869 = vsub.s32 0, %v1868
        %v1870 = vrot.slane %v1865, %v1869
        %v1871 = vrcp.pop %v1870
        %v1872 = vmul.f32 %v1860, %v1871
        %v1873 = vpack.c.bf16 %v1872, %v1872
        %v1874 = vld [vmem:[#allocation8] sm:$0xf]
        %v1875 = vld [vmem:[#allocation8 + $0x4] sm:$0xf]
        %v1876 = vld [vmem:[#allocation8 + $0x8] sm:$0xf]
        %v1877 = vld [vmem:[#allocation8 + $0xc] sm:$0xf]
        %v1878 = vld [vmem:[#allocation8 + $0x10] sm:$0xf]
        %v1879 = vld [vmem:[#allocation8 + $0x14] sm:$0xf]
        %v1880 = vld [vmem:[#allocation8 + $0x18] sm:$0xf]
        %v1881 = vld [vmem:[#allocation8 + $0x1c] sm:$0xf]
        %v1882 = vld [vmem:[#allocation8 + $0x20] sm:$0xf]
        %v1883 = vld [vmem:[#allocation8 + $0x24] sm:$0xf]
        %v1884 = vld [vmem:[#allocation8 + $0x28] sm:$0xf]
        %v1885 = vld [vmem:[#allocation8 + $0x2c] sm:$0xf]
        %v1886 = vld [vmem:[#allocation8 + $0x30] sm:$0xf]
        %v1887 = vld [vmem:[#allocation8 + $0x34] sm:$0xf]
        %v1888 = vld [vmem:[#allocation8 + $0x38] sm:$0xf]
        %v1889 = vld [vmem:[#allocation8 + $0x3c] sm:$0xf]
        %v1890 = vld [vmem:[%s14] sm:$0x1]
        %v1907 = vunpack.c.l.b16 %v1874
        %v1908 = vunpack.c.l.b16 %v1875
        %v1909 = vunpack.c.l.b16 %v1876
        %v1910 = vunpack.c.l.b16 %v1877
        %v1911 = vunpack.c.l.b16 %v1878
        %v1912 = vunpack.c.l.b16 %v1879
        %v1913 = vunpack.c.l.b16 %v1880
        %v1914 = vunpack.c.l.b16 %v1881
        %v1915 = vunpack.c.l.b16 %v1882
        %v1916 = vunpack.c.l.b16 %v1883
        %v1917 = vunpack.c.l.b16 %v1884
        %v1918 = vunpack.c.l.b16 %v1885
        %v1919 = vunpack.c.l.b16 %v1886
        %v1920 = vunpack.c.l.b16 %v1887
        %v1921 = vunpack.c.l.b16 %v1888
        %v1922 = vunpack.c.l.b16 %v1889
        %v1923 = vpack.c.b16 %v1908, %v1907
        %v1924 = vpack.c.b16 %v1910, %v1909
        %v1925 = vpack.c.b16 %v1912, %v1911
        %v1926 = vpack.c.b16 %v1914, %v1913
        %v1927 = vpack.c.b16 %v1916, %v1915
        %v1928 = vpack.c.b16 %v1918, %v1917
        %v1929 = vpack.c.b16 %v1920, %v1919
        %v1930 = vpack.c.b16 %v1922, %v1921
        %1939 = vmatprep.subr.bf16.mxu0 0
        %1940 = vmatpush1.bf16.msra.mxu0 %v1930
        %1941 = vmatprep.subr.bf16.mxu0 0
        %1942 = vmatpush1.bf16.msra.mxu0 %v1929
        %1943 = vmatprep.subr.bf16.mxu0 0
        %1944 = vmatpush1.bf16.msra.mxu0 %v1928
        %1945 = vmatprep.subr.bf16.mxu0 0
        %1946 = vmatpush1.bf16.msra.mxu0 %v1927
        %1947 = vmatprep.subr.bf16.mxu0 0
        %1948 = vmatpush1.bf16.msra.mxu0 %v1926
        %1949 = vmatprep.subr.bf16.mxu0 0
        %1950 = vmatpush1.bf16.msra.mxu0 %v1925
        %1951 = vmatprep.subr.bf16.mxu0 0
        %1952 = vmatpush1.bf16.msra.mxu0 %v1924
        %1953 = vmatprep.subr.bf16.mxu0 0
        %1954 = vmatpush1.bf16.msra.mxu0 %v1923
        %1955 = vmatprep.subr.bf16.mxu0 0
        %1956 = vmatpush2.bf16.msra.mxu0 0
        %1957 = vmatprep.subr.bf16.mxu0 0
        %1958 = vmatpush2.bf16.msra.mxu0 0
        %1959 = vmatprep.subr.bf16.mxu0 0
        %1960 = vmatpush2.bf16.msra.mxu0 0
        %1961 = vmatprep.subr.bf16.mxu0 0
        %1962 = vmatpush2.bf16.msra.mxu0 0
        %1963 = vmatprep.subr.bf16.mxu0 0
        %1964 = vmatpush2.bf16.msra.mxu0 0
        %1965 = vmatprep.subr.bf16.mxu0 0
        %1966 = vmatpush2.bf16.msra.mxu0 0
        %1967 = vmatprep.subr.bf16.mxu0 0
        %1968 = vmatpush2.bf16.msra.mxu0 0
        %1969 = vmatprep.subr.bf16.mxu0 0
        %1970 = vmatpush2.bf16.msra.mxu0 0
        %1971 = vmatprep.mubr.bf16.mxu0 0
        %1972 = vmatmul.mubr.bf16.gmra.mxu0 %v1873
        %v1973 = vpop.f32.mrf.mxu0
        %v1974 = vadd.f32 %v1890, %v1973
        %v1975 = vpop.f32.mrf.mxu0
        %v1976 = vpop.f32.mrf.mxu0
        %v1977 = vpop.f32.mrf.mxu0
        %1978 = vdwg.mxu0
        %1979 = vst [vmem:[%s550] sm:$0x1] %v1974
        %s1980 = sand.u32 %s369, 1
        %s1981 = scalar_lea.sflag [#allocation5], %s1980
        %s1982 = sand.u32 %s369, 1
        %s1983 = scalar_lea.vmem [#allocation9], %s1982
        // Predicated region
        $region93: #{tpu_custom_call.1} parent=79 // pred_check
          %p1984 = pneg %p379
        $region94: #{tpu_custom_call.1} parent=79 // pred_check_branch
          %1986 = sbr.rel (%p1984) target = $region96
        $region95: #{tpu_custom_call.1} parent=79 // pred_region
          %s1988 = ssub.s32 16, 16
          %1989 = vsyncadd %s1981, %s1988
          %s1990 = smul.addr %s31, 16
          %s1991 = scalar_lea.hbm %s15, %s1990
          %s1993 = sshll.u32 %s1983, 4
          %s1994 = int_to_ptr.vmem [resolvable:$true] %s1993
          %1996 = dma.vmem_to_hbm [thread:$0]  %s1994, 16, %s1991, %s1981
        $region96: #{tpu_custom_call.1} parent=79 // pred_fallthru
          _
      $region80: #{tpu_custom_call.1} parent=5 // pred_fallthru
        _
      %p1997 = scmp.le.s32.totalorder 2, %s26
      // Predicated region
      $region97: #{tpu_custom_call.1} parent=5 // pred_check
        %p1998 = pneg %p1997
      $region98: #{tpu_custom_call.1} parent=5 // pred_check_branch
        %2000 = sbr.rel (%p1998) target = $region100
      $region99: #{tpu_custom_call.1} parent=5 // pred_region
        %s2001 = ssub.s32 %s26, 2
        // Predicated region
        $region101: #{tpu_custom_call.1} parent=99 // pred_check
          %p2002 = pneg %p385
        $region102: #{tpu_custom_call.1} parent=99 // pred_check_branch
          %2004 = sbr.rel (%p2002) target = $region104
        $region103: #{tpu_custom_call.1} parent=99 // pred_region
          %s2005 = sand.u32 %s370, 1
          %s2006 = scalar_lea.sflag [#allocation5], %s2005
          %s2007 = sand.u32 %s370, 1
          %s2008 = scalar_lea.vmem [#allocation9], %s2007
          %2009 = dma.done %s2006, 16
        $region104: #{tpu_custom_call.1} parent=99 // pred_fallthru
          _
      $region100: #{tpu_custom_call.1} parent=5 // pred_fallthru
        _
    $region6: #{tpu_custom_call.1} parent=1 // loop_footer
      %s30 = sadd.s32 1, %s26
    $region7: #{tpu_custom_call.1} parent=1 // loop_footer_branch
      %25 = sbr.rel target = $region3
    $region8: #{tpu_custom_call.1} parent=1 // loop_exit
      _
    %2010 = vsyncpa [#allocation4], 1
    %s2011 = scalar_lea.sflag [#allocation4], 1
    %2012 = vsyncpa %s2011, 1
    %2013 = vsyncpa [#allocation7], 1
    %2014 = vsyncpa [#allocation5], 1
    %s2015 = scalar_lea.sflag [#allocation5], 1
    %2016 = vsyncpa %s2015, 1

</llo_original>
